<compile_context>
chip_gen: v5e
topology: v5e:2x2
jax: 0.10.0
libtpu: 0.0.40
codegen_flags: <defaults>
</compile_context>

<pallas_src>
import numpy as np
import jax
import jax.numpy as jnp
from jax.experimental import pallas as pl
from jax.experimental.pallas import tpu as pltpu


# ----------------------------------------------------------------------------
# Chip query: 2 TensorCores only on v7x; size-1 core axis elsewhere avoids
# duplicated partials / clamped blocks on 1-TC v5e/v6e.
# ----------------------------------------------------------------------------
def _num_tensorcores():
    try:
        kind = jax.devices()[0].device_kind.lower()
    except Exception:
        return 1
    return 2 if "v7" in kind else 1


# ----------------------------------------------------------------------------
# Generic mean( f(a - b) ) reduction kernel (used for XSigmoid and a standalone
# L1; combined_loss uses the fused SSIM+L1 kernel below instead).
# ----------------------------------------------------------------------------
def _make_mean_reduce_kernel(elt_fn, n_valid, nb, need_mask):
    def kernel(a_ref, b_ref, o_ref):
        c = pl.program_id(0)            # TensorCore split ("parallel")
        i = pl.program_id(1)            # reduction steps  ("arbitrary")
        steps = pl.num_programs(1)
        br, lanes = a_ref.shape

        @pl.when(i == 0)
        def _():
            o_ref[...] = jnp.zeros_like(o_ref)

        # upcast inside the kernel; HBM traffic stays in the storage dtype
        ey = a_ref[...].astype(jnp.float32) - b_ref[...].astype(jnp.float32)
        val = elt_fn(ey)

        def fold(v):
            # collapse (br,lanes) -> (8,lanes) with pure VPU adds so the
            # resident accumulator (and its per-step ld/st) is one vreg row.
            return v.reshape(-1, 8, lanes).sum(axis=0)

        if need_mask:
            blk = c * steps + i
            is_edge = blk >= nb - 1     # straddling last block or clamped dup

            @pl.when(jnp.logical_not(is_edge))
            def _():
                o_ref[...] += fold(val)

            @pl.when(is_edge)
            def _():
                start = blk * (br * lanes)
                row = jax.lax.broadcasted_iota(jnp.int32, (br, lanes), 0)
                col = jax.lax.broadcasted_iota(jnp.int32, (br, lanes), 1)
                flat = start + row * lanes + col
                o_ref[...] += fold(jnp.where(flat < n_valid, val, 0.0))
        else:
            o_ref[...] += fold(val)

    return kernel


def _mean_reduce(elt_fn, a, b, *, block_rows=2048, lanes=128):
    """mean(elt_fn(a - b)) over all elements via a lane-dense Pallas reduction."""
    assert a.shape == b.shape, (a.shape, b.shape)
    n = int(a.size)
    num_cores = _num_tensorcores()

    af = a.reshape(-1)
    bf = b.reshape(-1)
    rem = n % lanes
    if rem:
        # TODO(synk): a [1, n] lane-major layout would avoid this copy when n is
        # not a multiple of 128; the module's shapes never take this branch.
        pad = lanes - rem
        af = jnp.pad(af, (0, pad))
        bf = jnp.pad(bf, (0, pad))
    rows = af.size // lanes
    a2 = af.reshape(rows, lanes)        # lane-dense view: no dtype cast
    b2 = bf.reshape(rows, lanes)

    rows_per_core = pl.cdiv(rows, num_cores)
    br = min(block_rows, ((rows_per_core + 7) // 8) * 8)   # multiple of 8
    nb = pl.cdiv(rows, br)                                  # total row-blocks
    steps = pl.cdiv(nb, num_cores)                          # steps per core
    # mask is needed only if the last block sees invalid/OOB data or a core
    # replays a clamped duplicate block
    need_mask = (nb * br * lanes != n) or (num_cores * steps != nb)

    def in_map(c, i):
        # clamp so over-covering blocks stay in bounds; their contribution is
        # removed by the (gated) in-kernel iota mask.
        return (jnp.minimum(c * steps + i, nb - 1), 0)

    # VMEM: 2 inputs x 2 buffers x br x 128 x 4B = 4 MiB at br=2048 -> safely
    # under v5e's 16 MiB / v6e-v7x's 32 MiB default scoped limit.
    partials = pl.pallas_call(
        _make_mean_reduce_kernel(elt_fn, n, nb, need_mask),
        out_shape=jax.ShapeDtypeStruct((num_cores * 8, lanes), jnp.float32),
        grid=(num_cores, steps),
        in_specs=[
            pl.BlockSpec((br, lanes), in_map),
            pl.BlockSpec((br, lanes), in_map),
        ],
        out_specs=pl.BlockSpec((8, lanes), lambda c, i: (c, 0)),
        compiler_params=pltpu.CompilerParams(
            dimension_semantics=("parallel", "arbitrary")),
    )(a2, b2)

    return jnp.sum(partials) / n


def l1_loss(pred, target, **kw):
    return _mean_reduce(jnp.abs, pred, target, **kw)


def xsigmoid_loss(y_t, y_prime_t, **kw):
    # 2*ey/(1+exp(-ey)) - ey  ==  ey * tanh(ey/2)   (single EUP transcendental)
    return _mean_reduce(lambda ey: ey * jnp.tanh(0.5 * ey), y_t, y_prime_t, **kw)


# ----------------------------------------------------------------------------
# Fused SSIM + L1 kernel.
# 11x11 depthwise Gaussian conv (pad 5) expressed as Bh^T @ X @ Bw; G images
# are batched along rows (block-diagonal Bh^T) and the 5 conv operands are
# stacked along lanes (block-diagonal Bw), so each step is two MXU matmuls.
# ----------------------------------------------------------------------------
def _gaussian_1d(window_size, sigma):
    x = np.arange(window_size, dtype=np.float64)
    g = np.exp(-((x - window_size // 2) ** 2) / (2.0 * sigma ** 2))
    return g / g.sum()


def _conv_matrix(size, window_size, sigma):
    # Bm[i, o] = g[i - o + pad] for |i - o| <= pad, else 0 -> 1D conv w/ zero pad.
    g = _gaussian_1d(window_size, sigma)
    pad = window_size // 2
    Bm = np.zeros((size, size), np.float32)
    for o in range(size):
        for di in range(window_size):
            i = o + di - pad
            if 0 <= i < size:
                Bm[i, o] += g[di]
    return Bm


def _make_ssim_l1_kernel(n_images, G, H, W, need_mask):
    GH = G * H
    C1 = 0.01 ** 2
    C2 = 0.03 ** 2

    def kernel(x1_ref, x2_ref, bht_ref, bw5_ref, ssim_out, l1_out, s_ref, cv_ref):
        core = pl.program_id(0)
        i = pl.program_id(1)
        steps = pl.num_programs(1)

        @pl.when(i == 0)
        def _():
            ssim_out[...] = jnp.zeros_like(ssim_out)
            l1_out[...] = jnp.zeros_like(l1_out)

        x1 = x1_ref[...].astype(jnp.float32)          # (G*H, W)
        x2 = x2_ref[...].astype(jnp.float32)

        # Lane-stack the five blur operands into one (G*H, 5W) slab via sliced
        # VMEM stores (cheap lane-masked stores; avoids relying on tpu concat).
        s_ref[:, 0 * W:1 * W] = x1
        s_ref[:, 1 * W:2 * W] = x2
        s_ref[:, 2 * W:3 * W] = x1 * x1
        s_ref[:, 3 * W:4 * W] = x2 * x2
        s_ref[:, 4 * W:5 * W] = x1 * x2

        # Two MXU matmuls blur all 5 operands of G images at once.
        t = jnp.dot(s_ref[...], bw5_ref[...], preferred_element_type=jnp.float32)
        cv_ref[...] = jnp.dot(bht_ref[...], t, preferred_element_type=jnp.float32)

        mu1 = cv_ref[:, 0 * W:1 * W]
        mu2 = cv_ref[:, 1 * W:2 * W]
        e11 = cv_ref[:, 2 * W:3 * W]
        e22 = cv_ref[:, 3 * W:4 * W]
        e12 = cv_ref[:, 4 * W:5 * W]

        mu1_sq = mu1 * mu1
        mu2_sq = mu2 * mu2
        mu1_mu2 = mu1 * mu2
        sigma1_sq = e11 - mu1_sq
        sigma2_sq = e22 - mu2_sq
        sigma12 = e12 - mu1_mu2

        num = (2.0 * mu1_mu2 + C1) * (2.0 * sigma12 + C2)
        den = (mu1_sq + mu2_sq + C1) * (sigma1_sq + sigma2_sq + C2)
        ssim_map = num * pl.reciprocal(den, approx=True)   # divide -> EUP slot
        l1_map = jnp.abs(x1 - x2)                          # fused L1 (free: data in VMEM)

        if need_mask:
            # only traced when the grid over-covers the N images
            blk = core * steps + i
            row = jax.lax.broadcasted_iota(jnp.int32, (GH, W), 0)
            img = blk * G + row // H
            valid = img < n_images
            ssim_map = jnp.where(valid, ssim_map, 0.0)
            l1_map = jnp.where(valid, l1_map, 0.0)

        # lane-block accumulators resident in the output VMEM buffers
        ssim_out[...] += ssim_map
        l1_out[...] += l1_map

    return kernel


def _ssim_l1_sums(img1, img2, *, window_size=11, sigma=1.5):
    """Returns (sum(ssim_map), sum(|img1-img2|), element_count) in one pass."""
    assert img1.shape == img2.shape and img1.ndim == 4
    B, C, H, W = img1.shape
    N = B * C                                     # same Gaussian window per channel
    num_cores = _num_tensorcores()

    # Batch G images per step so the stacked row dim is MXU-sized (~256),
    # while keeping the block-diagonal Bh^T (G*H x G*H) modest.
    G = max(1, min(N, max(1, 256 // H)))
    while G > 1 and (G * H) % 8 != 0 and G < N:   # keep sublane-aligned blocks
        G -= 1
    if (G * H) % 8 != 0:
        G = N                                     # full-extent block is always legal
    GH = G * H

    nblocks = pl.cdiv(N, G)
    steps = pl.cdiv(nblocks, num_cores)
    need_mask = (nblocks * G != N) or (num_cores * steps != nblocks)

    x1 = img1.reshape(N * H, W)                   # free reshape, no dtype cast
    x2 = img2.reshape(N * H, W)

    bht = _conv_matrix(H, window_size, sigma).T                       # (H, H)
    bw = _conv_matrix(W, window_size, sigma)                          # (W, W)
    bht_g = jnp.asarray(np.kron(np.eye(G, dtype=np.float32), bht))    # (GH, GH)
    bw5 = jnp.asarray(np.kron(np.eye(5, dtype=np.float32), bw))       # (5W, 5W)

    def xmap(c, i):
        return (jnp.minimum(c * steps + i, nblocks - 1), 0)

    ssim_p, l1_p = pl.pallas_call(
        _make_ssim_l1_kernel(N, G, H, W, need_mask),
        out_shape=(jax.ShapeDtypeStruct((num_cores * GH, W), jnp.float32),
                   jax.ShapeDtypeStruct((num_cores * GH, W), jnp.float32)),
        grid=(num_cores, steps),
        in_specs=[
            pl.BlockSpec((GH, W), xmap),
            pl.BlockSpec((GH, W), xmap),
            pl.BlockSpec((GH, GH), lambda c, i: (0, 0)),
            pl.BlockSpec((5 * W, 5 * W), lambda c, i: (0, 0)),
        ],
        out_specs=(pl.BlockSpec((GH, W), lambda c, i: (c, 0)),
                   pl.BlockSpec((GH, W), lambda c, i: (c, 0))),
        scratch_shapes=[pltpu.VMEM((GH, 5 * W), jnp.float32),   # stacked operands
                        pltpu.VMEM((GH, 5 * W), jnp.float32)],  # stacked conv result
        compiler_params=pltpu.CompilerParams(
            dimension_semantics=("parallel", "arbitrary")),
    )(x1, x2, bht_g, bw5)

    return jnp.sum(ssim_p), jnp.sum(l1_p), N * H * W


def ssim_loss(img1, img2, **kw):
    """1 - mean(ssim_map), matching SSIMLoss(window_size=11, size_average=True)."""
    ssim_sum, _, n = _ssim_l1_sums(img1, img2, **kw)
    return 1.0 - ssim_sum / n


def combined_loss(predicted_noise_mag, noise_mag, *, par=0.5):
    """CombinedLoss.forward: par * L1 + (1 - par) * SSIMLoss (single fused pass)."""
    ssim_sum, l1_sum, n = _ssim_l1_sums(predicted_noise_mag, noise_mag)
    l1 = l1_sum / n
    ssim_l = 1.0 - ssim_sum / n
    return par * l1 + (1.0 - par) * ssim_l


# ----------------------------------------------------------------------------
# Plain-JAX references (used only for the correctness check in __main__).
# ----------------------------------------------------------------------------
def _ssim_ref(img1, img2, window_size=11, sigma=1.5):
    _, C, _, _ = img1.shape
    g = jnp.asarray(_gaussian_1d(window_size, sigma), dtype=jnp.float32)
    w2 = jnp.outer(g, g)
    kern = jnp.broadcast_to(w2, (C, 1, window_size, window_size))
    pad = window_size // 2

    def conv(t):
        return jax.lax.conv_general_dilated(
            t, kern, window_strides=(1, 1), padding=[(pad, pad), (pad, pad)],
            dimension_numbers=("NCHW", "OIHW", "NCHW"), feature_group_count=C,
            precision=jax.lax.Precision.HIGHEST)

    mu1, mu2 = conv(img1), conv(img2)
    mu1_sq, mu2_sq, mu1_mu2 = mu1 * mu1, mu2 * mu2, mu1 * mu2
    s1 = conv(img1 * img1) - mu1_sq
    s2 = conv(img2 * img2) - mu2_sq
    s12 = conv(img1 * img2) - mu1_mu2
    c1, c2 = 0.01 ** 2, 0.03 ** 2
    ssim_map = ((2 * mu1_mu2 + c1) * (2 * s12 + c2)) / (
        (mu1_sq + mu2_sq + c1) * (s1 + s2 + c2))
    return jnp.mean(ssim_map)


def _combined_ref(pred, target, par):
    l1 = jnp.mean(jnp.abs(pred - target))
    return par * l1 + (1.0 - par) * (1.0 - _ssim_ref(pred, target))


if __name__ == "__main__":
    key = jax.random.PRNGKey(0)
    k1, k2 = jax.random.split(key)
    predicted_noise_mag = jax.random.normal(k1, (2, 4, 16, 16), dtype=jnp.float32)
    noise_mag = jax.random.normal(k2, (2, 4, 16, 16), dtype=jnp.float32)
    par = 0.5

    # CombinedLoss.forward via the fused SSIM+L1 Pallas kernel
    loss = combined_loss(predicted_noise_mag, noise_mag, par=par)
    jax.block_until_ready(loss)

    # also exercise the module's XSigmoidLoss member (mean-reduce kernel)
    xs = xsigmoid_loss(predicted_noise_mag, noise_mag)
    jax.block_until_ready(xs)

    # correctness checks against plain-JAX references
    ref_l1 = jnp.mean(jnp.abs(predicted_noise_mag - noise_mag))
    ey = predicted_noise_mag - noise_mag
    ref_xs = jnp.mean(2.0 * ey / (1.0 + jnp.exp(-ey)) - ey)
    ref_ssim_l = 1.0 - _ssim_ref(predicted_noise_mag, noise_mag)
    ref_comb = _combined_ref(predicted_noise_mag, noise_mag, par)

    assert jnp.allclose(l1_loss(predicted_noise_mag, noise_mag), ref_l1,
                        rtol=1e-4, atol=1e-5), "L1 mismatch"
    assert jnp.allclose(xs, ref_xs, rtol=1e-4, atol=1e-5), "XSigmoid mismatch"
    assert jnp.allclose(ssim_loss(predicted_noise_mag, noise_mag), ref_ssim_l,
                        rtol=1e-2, atol=1e-2), "SSIM mismatch"
    assert jnp.allclose(loss, ref_comb, rtol=5e-3, atol=5e-3), "Combined mismatch"

    print("KERNEL_OK")
</pallas_src>

<mosaic_0001>
module attributes {stable_mosaic.version = 11 : i64} {
  func.func @kernel(%arg0: i32, %arg1: i32, %arg2: memref<128x16xf32, #tpu.memory_space<vmem>>, %arg3: memref<128x16xf32, #tpu.memory_space<vmem>>, %arg4: memref<128x128xf32, #tpu.memory_space<vmem>>, %arg5: memref<80x80xf32, #tpu.memory_space<vmem>>, %arg6: memref<128x16xf32, #tpu.memory_space<vmem>>, %arg7: memref<128x16xf32, #tpu.memory_space<vmem>>, %arg8: memref<128x80xf32, #tpu.memory_space<vmem>>, %arg9: memref<128x80xf32, #tpu.memory_space<vmem>>) attributes {dimension_semantics = [#tpu.dimension_semantics<parallel>, #tpu.dimension_semantics<arbitrary>], iteration_bounds = array<i64: 1, 1>, scalar_prefetch = 0 : i64, scratch_operands = 2 : i64, tpu.core_type = #tpu.core_type<tc>, window_params = [{transform_indices = @transform_0, window_bounds = array<i64: 128, 16>}, {transform_indices = @transform_1, window_bounds = array<i64: 128, 16>}, {pipeline_mode = #tpu.pipeline_mode<synchronous>, transform_indices = @transform_2, window_bounds = array<i64: 128, 128>}, {pipeline_mode = #tpu.pipeline_mode<synchronous>, transform_indices = @transform_3, window_bounds = array<i64: 80, 80>}, {transform_indices = @transform_4, window_bounds = array<i64: 128, 16>}, {transform_indices = @transform_5, window_bounds = array<i64: 128, 16>}]} {
    %c0_i32 = arith.constant 0 : i32
    %0 = arith.cmpi eq, %arg1, %c0_i32 : i32
    %1 = arith.extui %0 : i1 to i32
    %c0_i32_0 = arith.constant 0 : i32
    %2 = arith.cmpi ne, %1, %c0_i32_0 : i32
    scf.if %2 {
      %cst_43 = arith.constant 0.000000e+00 : f32
      %56 = vector.broadcast %cst_43 : f32 to vector<128x16xf32>
      %c0_44 = arith.constant 0 : index
      %c0_45 = arith.constant 0 : index
      %57 = vector.load %arg6[%c0_44, %c0_45] : memref<128x16xf32, #tpu.memory_space<vmem>>, vector<128x16xf32>
      tpu.vector_store %arg6[%c0_44, %c0_45], %56 {strides = array<i32>} : memref<128x16xf32, #tpu.memory_space<vmem>>, vector<128x16xf32>,
      %cst_46 = arith.constant 0.000000e+00 : f32
      %58 = vector.broadcast %cst_46 : f32 to vector<128x16xf32>
      %c0_47 = arith.constant 0 : index
      %c0_48 = arith.constant 0 : index
      %59 = vector.load %arg7[%c0_47, %c0_48] : memref<128x16xf32, #tpu.memory_space<vmem>>, vector<128x16xf32>
      tpu.vector_store %arg7[%c0_47, %c0_48], %58 {strides = array<i32>} : memref<128x16xf32, #tpu.memory_space<vmem>>, vector<128x16xf32>,
    } else {
    }
    %c0 = arith.constant 0 : index
    %c0_1 = arith.constant 0 : index
    %3 = vector.load %arg2[%c0, %c0_1] : memref<128x16xf32, #tpu.memory_space<vmem>>, vector<128x16xf32>
    %c0_2 = arith.constant 0 : index
    %c0_3 = arith.constant 0 : index
    %4 = vector.load %arg3[%c0_2, %c0_3] : memref<128x16xf32, #tpu.memory_space<vmem>>, vector<128x16xf32>
    %c0_4 = arith.constant 0 : index
    %c0_5 = arith.constant 0 : index
    %5 = vector.load %arg8[%c0_4, %c0_5] : memref<128x80xf32, #tpu.memory_space<vmem>>, vector<128x16xf32>
    tpu.vector_store %arg8[%c0_4, %c0_5], %3 {strides = array<i32>} : memref<128x80xf32, #tpu.memory_space<vmem>>, vector<128x16xf32>,
    %c0_6 = arith.constant 0 : index
    %c16 = arith.constant 16 : index
    %6 = vector.load %arg8[%c0_6, %c16] : memref<128x80xf32, #tpu.memory_space<vmem>>, vector<128x16xf32>
    tpu.vector_store %arg8[%c0_6, %c16], %4 {strides = array<i32>} : memref<128x80xf32, #tpu.memory_space<vmem>>, vector<128x16xf32>,
    %7 = arith.mulf %3, %3 : vector<128x16xf32>
    %c0_7 = arith.constant 0 : index
    %c32 = arith.constant 32 : index
    %8 = vector.load %arg8[%c0_7, %c32] : memref<128x80xf32, #tpu.memory_space<vmem>>, vector<128x16xf32>
    tpu.vector_store %arg8[%c0_7, %c32], %7 {strides = array<i32>} : memref<128x80xf32, #tpu.memory_space<vmem>>, vector<128x16xf32>,
    %9 = arith.mulf %4, %4 : vector<128x16xf32>
    %c0_8 = arith.constant 0 : index
    %c48 = arith.constant 48 : index
    %10 = vector.load %arg8[%c0_8, %c48] : memref<128x80xf32, #tpu.memory_space<vmem>>, vector<128x16xf32>
    tpu.vector_store %arg8[%c0_8, %c48], %9 {strides = array<i32>} : memref<128x80xf32, #tpu.memory_space<vmem>>, vector<128x16xf32>,
    %11 = arith.mulf %3, %4 : vector<128x16xf32>
    %c0_9 = arith.constant 0 : index
    %c64 = arith.constant 64 : index
    %12 = vector.load %arg8[%c0_9, %c64] : memref<128x80xf32, #tpu.memory_space<vmem>>, vector<128x16xf32>
    tpu.vector_store %arg8[%c0_9, %c64], %11 {strides = array<i32>} : memref<128x80xf32, #tpu.memory_space<vmem>>, vector<128x16xf32>,
    %c0_10 = arith.constant 0 : index
    %c0_11 = arith.constant 0 : index
    %13 = vector.load %arg8[%c0_10, %c0_11] : memref<128x80xf32, #tpu.memory_space<vmem>>, vector<128x80xf32>
    %c0_12 = arith.constant 0 : index
    %c0_13 = arith.constant 0 : index
    %14 = vector.load %arg5[%c0_12, %c0_13] : memref<80x80xf32, #tpu.memory_space<vmem>>, vector<80x80xf32>
    %cst = arith.constant dense<0.000000e+00> : vector<128x80xf32>
    %15 = tpu.matmul %13, %14, %cst {dimension_numbers = #tpu.dot_dimension_numbers<[1], [0], [0], [1], [0, 0, 1, 1], [], []>} : vector<128x80xf32>, vector<80x80xf32>, vector<128x80xf32> -> vector<128x80xf32>
    %c0_14 = arith.constant 0 : index
    %c0_15 = arith.constant 0 : index
    %16 = vector.load %arg4[%c0_14, %c0_15] : memref<128x128xf32, #tpu.memory_space<vmem>>, vector<128x128xf32>
    %cst_16 = arith.constant dense<0.000000e+00> : vector<128x80xf32>
    %17 = tpu.matmul %16, %15, %cst_16 {dimension_numbers = #tpu.dot_dimension_numbers<[1], [0], [0], [1], [0, 0, 1, 1], [], []>} : vector<128x128xf32>, vector<128x80xf32>, vector<128x80xf32> -> vector<128x80xf32>
    %c0_17 = arith.constant 0 : index
    %c0_18 = arith.constant 0 : index
    %18 = vector.load %arg9[%c0_17, %c0_18] : memref<128x80xf32, #tpu.memory_space<vmem>>, vector<128x80xf32>
    tpu.vector_store %arg9[%c0_17, %c0_18], %17 {strides = array<i32>} : memref<128x80xf32, #tpu.memory_space<vmem>>, vector<128x80xf32>,
    %c0_19 = arith.constant 0 : index
    %c0_20 = arith.constant 0 : index
    %19 = vector.load %arg9[%c0_19, %c0_20] : memref<128x80xf32, #tpu.memory_space<vmem>>, vector<128x16xf32>
    %c0_21 = arith.constant 0 : index
    %c16_22 = arith.constant 16 : index
    %20 = vector.load %arg9[%c0_21, %c16_22] : memref<128x80xf32, #tpu.memory_space<vmem>>, vector<128x16xf32>
    %c0_23 = arith.constant 0 : index
    %c32_24 = arith.constant 32 : index
    %21 = vector.load %arg9[%c0_23, %c32_24] : memref<128x80xf32, #tpu.memory_space<vmem>>, vector<128x16xf32>
    %c0_25 = arith.constant 0 : index
    %c48_26 = arith.constant 48 : index
    %22 = vector.load %arg9[%c0_25, %c48_26] : memref<128x80xf32, #tpu.memory_space<vmem>>, vector<128x16xf32>
    %c0_27 = arith.constant 0 : index
    %c64_28 = arith.constant 64 : index
    %23 = vector.load %arg9[%c0_27, %c64_28] : memref<128x80xf32, #tpu.memory_space<vmem>>, vector<128x16xf32>
    %24 = arith.mulf %19, %19 : vector<128x16xf32>
    %25 = arith.mulf %20, %20 : vector<128x16xf32>
    %26 = arith.mulf %19, %20 : vector<128x16xf32>
    %27 = arith.subf %21, %24 : vector<128x16xf32>
    %28 = arith.subf %22, %25 : vector<128x16xf32>
    %29 = arith.subf %23, %26 : vector<128x16xf32>
    %cst_29 = arith.constant 2.000000e+00 : f32
    %30 = vector.broadcast %cst_29 : f32 to vector<128x16xf32>
    %31 = arith.mulf %30, %26 : vector<128x16xf32>
    %cst_30 = arith.constant 9.99999974E-5 : f32
    %32 = vector.broadcast %cst_30 : f32 to vector<128x16xf32>
    %33 = arith.addf %31, %32 : vector<128x16xf32>
    %cst_31 = arith.constant 2.000000e+00 : f32
    %34 = vector.broadcast %cst_31 : f32 to vector<128x16xf32>
    %35 = arith.mulf %34, %29 : vector<128x16xf32>
    %cst_32 = arith.constant 8.99999984E-4 : f32
    %36 = vector.broadcast %cst_32 : f32 to vector<128x16xf32>
    %37 = arith.addf %35, %36 : vector<128x16xf32>
    %38 = arith.mulf %33, %37 : vector<128x16xf32>
    %39 = arith.addf %24, %25 : vector<128x16xf32>
    %cst_33 = arith.constant 9.99999974E-5 : f32
    %40 = vector.broadcast %cst_33 : f32 to vector<128x16xf32>
    %41 = arith.addf %39, %40 : vector<128x16xf32>
    %42 = arith.addf %27, %28 : vector<128x16xf32>
    %cst_34 = arith.constant 8.99999984E-4 : f32
    %43 = vector.broadcast %cst_34 : f32 to vector<128x16xf32>
    %44 = arith.addf %42, %43 : vector<128x16xf32>
    %45 = arith.mulf %41, %44 : vector<128x16xf32>
    %46 = tpu.reciprocal %45 {approx = true} : vector<128x16xf32> -> vector<128x16xf32>
    %47 = arith.mulf %38, %46 : vector<128x16xf32>
    %48 = arith.subf %3, %4 : vector<128x16xf32>
    %49 = math.absf %48 : vector<128x16xf32>
    %c0_35 = arith.constant 0 : index
    %c0_36 = arith.constant 0 : index
    %50 = vector.load %arg6[%c0_35, %c0_36] : memref<128x16xf32, #tpu.memory_space<vmem>>, vector<128x16xf32>
    %51 = arith.addf %50, %47 : vector<128x16xf32>
    %c0_37 = arith.constant 0 : index
    %c0_38 = arith.constant 0 : index
    %52 = vector.load %arg6[%c0_37, %c0_38] : memref<128x16xf32, #tpu.memory_space<vmem>>, vector<128x16xf32>
    tpu.vector_store %arg6[%c0_37, %c0_38], %51 {strides = array<i32>} : memref<128x16xf32, #tpu.memory_space<vmem>>, vector<128x16xf32>,
    %c0_39 = arith.constant 0 : index
    %c0_40 = arith.constant 0 : index
    %53 = vector.load %arg7[%c0_39, %c0_40] : memref<128x16xf32, #tpu.memory_space<vmem>>, vector<128x16xf32>
    %54 = arith.addf %53, %49 : vector<128x16xf32>
    %c0_41 = arith.constant 0 : index
    %c0_42 = arith.constant 0 : index
    %55 = vector.load %arg7[%c0_41, %c0_42] : memref<128x16xf32, #tpu.memory_space<vmem>>, vector<128x16xf32>
    tpu.vector_store %arg7[%c0_41, %c0_42], %54 {strides = array<i32>} : memref<128x16xf32, #tpu.memory_space<vmem>>, vector<128x16xf32>,
    return
  }
  func.func @transform_0(%arg0: i32, %arg1: i32) -> (i32, i32) {
    %c1_i32 = arith.constant 1 : i32
    %0 = arith.muli %arg0, %c1_i32 : i32
    %1 = arith.addi %0, %arg1 : i32
    %c0_i32 = arith.constant 0 : i32
    %2 = arith.minsi %1, %c0_i32 : i32
    %c0_i32_0 = arith.constant 0 : i32
    %c0_i32_1 = arith.constant 0 : i32
    return %2, %c0_i32_0 : i32, i32
  }
  func.func @transform_1(%arg0: i32, %arg1: i32) -> (i32, i32) {
    %c1_i32 = arith.constant 1 : i32
    %0 = arith.muli %arg0, %c1_i32 : i32
    %1 = arith.addi %0, %arg1 : i32
    %c0_i32 = arith.constant 0 : i32
    %2 = arith.minsi %1, %c0_i32 : i32
    %c0_i32_0 = arith.constant 0 : i32
    %c0_i32_1 = arith.constant 0 : i32
    return %2, %c0_i32_0 : i32, i32
  }
  func.func @transform_2(%arg0: i32, %arg1: i32) -> (i32, i32) {
    %c0_i32 = arith.constant 0 : i32
    %c0_i32_0 = arith.constant 0 : i32
    %c0_i32_1 = arith.constant 0 : i32
    return %c0_i32, %c0_i32_0 : i32, i32
  }
  func.func @transform_3(%arg0: i32, %arg1: i32) -> (i32, i32) {
    %c0_i32 = arith.constant 0 : i32
    %c0_i32_0 = arith.constant 0 : i32
    %c0_i32_1 = arith.constant 0 : i32
    return %c0_i32, %c0_i32_0 : i32, i32
  }
  func.func @transform_4(%arg0: i32, %arg1: i32) -> (i32, i32) {
    %c0_i32 = arith.constant 0 : i32
    %c0_i32_0 = arith.constant 0 : i32
    return %arg0, %c0_i32 : i32, i32
  }
  func.func @transform_5(%arg0: i32, %arg1: i32) -> (i32, i32) {
    %c0_i32 = arith.constant 0 : i32
    %c0_i32_0 = arith.constant 0 : i32
    return %arg0, %c0_i32 : i32, i32
  }
}

</mosaic_0001>

<llo_original>
// kernel: tpu_custom_call.1
$region0: #{tpu_custom_call.1}
  #allocation0 [shape = 'u32[]', space=smem, size = 0x4, offset = 0x4, fixed_abs, tag = 'smem constant byte address 0x4 - core index']
  #allocation1 [shape = 'u32[72,128]{1,0:T(1,128)}', space=vmem, size = 0x9000, scoped, tag = 'internal scratch']
  #allocation2 [shape = 'f32[128,80]{1,0:T(8,128)}', space=vmem, size = 0x10000, scoped, tag = 'scratch operand']
  #allocation3 [shape = 'f32[128,80]{1,0:T(8,128)}', space=vmem, size = 0x10000, scoped, tag = 'scratch operand']
  %s0 = inlined_call_operand.vmem [shape: f32[128,16], index: 0, kind: input, shape index: {}]
  %s1 = inlined_call_operand.vmem [shape: f32[128,16], index: 1, kind: input, shape index: {}]
  %s2 = inlined_call_operand.vmem [shape: f32[128,128], index: 2, kind: input, shape index: {}]
  %s3 = inlined_call_operand.vmem [shape: f32[80,80], index: 3, kind: input, shape index: {}]
  %s4 = inlined_call_operand.vmem [shape: f32[128,16], index: 4, kind: output, shape index: {0}]
  %s5 = inlined_call_operand.vmem [shape: f32[128,16], index: 5, kind: output, shape index: {1}]
  %6 = xla_tuple %s4, %s5
  %s7 = sld [smem:[#allocation0]]
  $region38: #{tpu_custom_call.1} parent=0
    _
  %s9 = ssub.s32 1, %s7
  %s10 = scalar_select 0, %s9, %s7
  // Predicated region
  $region2: #{tpu_custom_call.1} parent=0 // pred_check
    _
  $region3: #{tpu_custom_call.1} parent=0 // pred_check_branch
    %12 = sbr.rel (0) target = $region5
  $region4: #{tpu_custom_call.1} parent=0 // pred_region
    %s13 = sadd.s32 0, 0
    %p14 = scmp.lt.s32.totalorder %s13, 0
    %s15 = scalar_select %p14, %s13, 0
    %s16 = smul.u32 16, %s15
    %p17 = scmp.lt.s32.totalorder %s16, 15
    %s18 = scalar_select %p17, %s16, 15
    %s19 = smul.addr %s18, 8
    %s20 = scalar_lea.vmem %s0, %s19
    %s21 = sadd.s32 0, 0
    %p22 = scmp.lt.s32.totalorder %s21, 0
    %s23 = scalar_select %p22, %s21, 0
    %s24 = smul.u32 16, %s23
  $region5: #{tpu_custom_call.1} parent=0 // pred_fallthru
    _
  // Predicated region
  $region6: #{tpu_custom_call.1} parent=0 // pred_check
    _
  $region7: #{tpu_custom_call.1} parent=0 // pred_check_branch
    %26 = sbr.rel (0) target = $region9
  $region8: #{tpu_custom_call.1} parent=0 // pred_region
    %s27 = sadd.s32 0, 0
    %p28 = scmp.lt.s32.totalorder %s27, 0
    %s29 = scalar_select %p28, %s27, 0
    %s30 = smul.u32 16, %s29
    %p31 = scmp.lt.s32.totalorder %s30, 15
    %s32 = scalar_select %p31, %s30, 15
    %s33 = smul.addr %s32, 8
    %s34 = scalar_lea.vmem %s1, %s33
    %s35 = sadd.s32 0, 0
    %p36 = scmp.lt.s32.totalorder %s35, 0
    %s37 = scalar_select %p36, %s35, 0
    %s38 = smul.u32 16, %s37
  $region9: #{tpu_custom_call.1} parent=0 // pred_fallthru
    _
  // Predicated region
  $region10: #{tpu_custom_call.1} parent=0 // pred_check
    _
  $region11: #{tpu_custom_call.1} parent=0 // pred_check_branch
    %40 = sbr.rel (0) target = $region13
  $region12: #{tpu_custom_call.1} parent=0 // pred_region
    _
  $region13: #{tpu_custom_call.1} parent=0 // pred_fallthru
    _
  // Predicated region
  $region14: #{tpu_custom_call.1} parent=0 // pred_check
    _
  $region15: #{tpu_custom_call.1} parent=0 // pred_check_branch
    %42 = sbr.rel (0) target = $region17
  $region16: #{tpu_custom_call.1} parent=0 // pred_region
    _
  $region17: #{tpu_custom_call.1} parent=0 // pred_fallthru
    _
  %s43 = sadd.s32 0, 0
  %p44 = scmp.lt.s32.totalorder %s43, 0
  %s45 = scalar_select %p44, %s43, 0
  %s46 = smul.u32 16, %s45
  %p47 = scmp.lt.s32.totalorder %s46, 15
  %s48 = scalar_select %p47, %s46, 15
  %s49 = smul.addr %s48, 8
  %s50 = scalar_lea.vmem %s0, %s49
  %s51 = sadd.s32 0, 0
  %p52 = scmp.lt.s32.totalorder %s51, 0
  %s53 = scalar_select %p52, %s51, 0
  %s54 = smul.u32 16, %s53
  %p55 = scmp.lt.s32.totalorder %s54, 15
  %s56 = scalar_select %p55, %s54, 15
  %s57 = smul.addr %s56, 8
  %s58 = scalar_lea.vmem %s1, %s57
  %s59 = sadd.s32 0, 0
  %p60 = scmp.lt.s32.totalorder %s59, 0
  %s61 = scalar_select %p60, %s59, 0
  %s62 = smul.u32 16, %s61
  %p63 = scmp.lt.s32.totalorder %s62, 15
  %s64 = scalar_select %p63, %s62, 15
  %s65 = smul.addr %s64, 8
  %s66 = scalar_lea.vmem %s0, %s65
  %s67 = sadd.s32 0, 0
  %p68 = scmp.lt.s32.totalorder %s67, 0
  %s69 = scalar_select %p68, %s67, 0
  %s70 = smul.u32 16, %s69
  %s71 = sadd.s32 0, 0
  %p72 = scmp.lt.s32.totalorder %s71, 0
  %s73 = scalar_select %p72, %s71, 0
  %s74 = smul.u32 16, %s73
  %p75 = scmp.lt.s32.totalorder %s74, 15
  %s76 = scalar_select %p75, %s74, 15
  %s77 = smul.addr %s76, 8
  %s78 = scalar_lea.vmem %s1, %s77
  %s79 = sadd.s32 0, 0
  %p80 = scmp.lt.s32.totalorder %s79, 0
  %s81 = scalar_select %p80, %s79, 0
  %s82 = smul.u32 16, %s81
  %p83 = scmp.eq.s32.totalorder 0, 0
  // Predicated region
  $region18: #{tpu_custom_call.1} parent=0 // pred_check
    %p84 = pneg %p83
  $region19: #{tpu_custom_call.1} parent=0 // pred_check_branch
    %86 = sbr.rel (%p84) target = $region21
  $region20: #{tpu_custom_call.1} parent=0 // pred_region
    %vm87 = vcmask 130048
    %88 = vst.msk [vmem:[%s4] sm:$0xff] %vm87, 0.0
    %89 = vst.msk [vmem:[%s4 + $0x8] sm:$0xff] %vm87, 0.0
    %90 = vst.msk [vmem:[%s4 + $0x10] sm:$0xff] %vm87, 0.0
    %91 = vst.msk [vmem:[%s4 + $0x18] sm:$0xff] %vm87, 0.0
    %92 = vst.msk [vmem:[%s4 + $0x20] sm:$0xff] %vm87, 0.0
    %93 = vst.msk [vmem:[%s4 + $0x28] sm:$0xff] %vm87, 0.0
    %94 = vst.msk [vmem:[%s4 + $0x30] sm:$0xff] %vm87, 0.0
    %95 = vst.msk [vmem:[%s4 + $0x38] sm:$0xff] %vm87, 0.0
    %96 = vst.msk [vmem:[%s4 + $0x40] sm:$0xff] %vm87, 0.0
    %97 = vst.msk [vmem:[%s4 + $0x48] sm:$0xff] %vm87, 0.0
    %98 = vst.msk [vmem:[%s4 + $0x50] sm:$0xff] %vm87, 0.0
    %99 = vst.msk [vmem:[%s4 + $0x58] sm:$0xff] %vm87, 0.0
    %100 = vst.msk [vmem:[%s4 + $0x60] sm:$0xff] %vm87, 0.0
    %101 = vst.msk [vmem:[%s4 + $0x68] sm:$0xff] %vm87, 0.0
    %102 = vst.msk [vmem:[%s4 + $0x70] sm:$0xff] %vm87, 0.0
    %103 = vst.msk [vmem:[%s4 + $0x78] sm:$0xff] %vm87, 0.0
    %104 = vst.msk [vmem:[%s5] sm:$0xff] %vm87, 0.0
    %105 = vst.msk [vmem:[%s5 + $0x8] sm:$0xff] %vm87, 0.0
    %106 = vst.msk [vmem:[%s5 + $0x10] sm:$0xff] %vm87, 0.0
    %107 = vst.msk [vmem:[%s5 + $0x18] sm:$0xff] %vm87, 0.0
    %108 = vst.msk [vmem:[%s5 + $0x20] sm:$0xff] %vm87, 0.0
    %109 = vst.msk [vmem:[%s5 + $0x28] sm:$0xff] %vm87, 0.0
    %110 = vst.msk [vmem:[%s5 + $0x30] sm:$0xff] %vm87, 0.0
    %111 = vst.msk [vmem:[%s5 + $0x38] sm:$0xff] %vm87, 0.0
    %112 = vst.msk [vmem:[%s5 + $0x40] sm:$0xff] %vm87, 0.0
    %113 = vst.msk [vmem:[%s5 + $0x48] sm:$0xff] %vm87, 0.0
    %114 = vst.msk [vmem:[%s5 + $0x50] sm:$0xff] %vm87, 0.0
    %115 = vst.msk [vmem:[%s5 + $0x58] sm:$0xff] %vm87, 0.0
    %116 = vst.msk [vmem:[%s5 + $0x60] sm:$0xff] %vm87, 0.0
    %117 = vst.msk [vmem:[%s5 + $0x68] sm:$0xff] %vm87, 0.0
    %118 = vst.msk [vmem:[%s5 + $0x70] sm:$0xff] %vm87, 0.0
    %119 = vst.msk [vmem:[%s5 + $0x78] sm:$0xff] %vm87, 0.0
  $region21: #{tpu_custom_call.1} parent=0 // pred_fallthru
    _
  %v120 = vld [vmem:[%s66] sm:$0xff]
  %v121 = vld [vmem:[%s66 + $0x8] sm:$0xff]
  %v122 = vld [vmem:[%s66 + $0x10] sm:$0xff]
  %v123 = vld [vmem:[%s66 + $0x18] sm:$0xff]
  %v124 = vld [vmem:[%s66 + $0x20] sm:$0xff]
  %v125 = vld [vmem:[%s66 + $0x28] sm:$0xff]
  %v126 = vld [vmem:[%s66 + $0x30] sm:$0xff]
  %v127 = vld [vmem:[%s66 + $0x38] sm:$0xff]
  %v128 = vld [vmem:[%s66 + $0x40] sm:$0xff]
  %v129 = vld [vmem:[%s66 + $0x48] sm:$0xff]
  %v130 = vld [vmem:[%s66 + $0x50] sm:$0xff]
  %v131 = vld [vmem:[%s66 + $0x58] sm:$0xff]
  %v132 = vld [vmem:[%s66 + $0x60] sm:$0xff]
  %v133 = vld [vmem:[%s66 + $0x68] sm:$0xff]
  %v134 = vld [vmem:[%s66 + $0x70] sm:$0xff]
  %v135 = vld [vmem:[%s66 + $0x78] sm:$0xff]
  %v136 = vld [vmem:[%s78] sm:$0xff]
  %v137 = vld [vmem:[%s78 + $0x8] sm:$0xff]
  %v138 = vld [vmem:[%s78 + $0x10] sm:$0xff]
  %v139 = vld [vmem:[%s78 + $0x18] sm:$0xff]
  %v140 = vld [vmem:[%s78 + $0x20] sm:$0xff]
  %v141 = vld [vmem:[%s78 + $0x28] sm:$0xff]
  %v142 = vld [vmem:[%s78 + $0x30] sm:$0xff]
  %v143 = vld [vmem:[%s78 + $0x38] sm:$0xff]
  %v144 = vld [vmem:[%s78 + $0x40] sm:$0xff]
  %v145 = vld [vmem:[%s78 + $0x48] sm:$0xff]
  %v146 = vld [vmem:[%s78 + $0x50] sm:$0xff]
  %v147 = vld [vmem:[%s78 + $0x58] sm:$0xff]
  %v148 = vld [vmem:[%s78 + $0x60] sm:$0xff]
  %v149 = vld [vmem:[%s78 + $0x68] sm:$0xff]
  %v150 = vld [vmem:[%s78 + $0x70] sm:$0xff]
  %v151 = vld [vmem:[%s78 + $0x78] sm:$0xff]
  %vm152 = vcmask 130048
  %153 = vst.msk [vmem:[#allocation2] sm:$0xff] %vm152, %v120
  %154 = vst.msk [vmem:[#allocation2 + $0x8] sm:$0xff] %vm152, %v121
  %155 = vst.msk [vmem:[#allocation2 + $0x10] sm:$0xff] %vm152, %v122
  %156 = vst.msk [vmem:[#allocation2 + $0x18] sm:$0xff] %vm152, %v123
  %157 = vst.msk [vmem:[#allocation2 + $0x20] sm:$0xff] %vm152, %v124
  %158 = vst.msk [vmem:[#allocation2 + $0x28] sm:$0xff] %vm152, %v125
  %159 = vst.msk [vmem:[#allocation2 + $0x30] sm:$0xff] %vm152, %v126
  %160 = vst.msk [vmem:[#allocation2 + $0x38] sm:$0xff] %vm152, %v127
  %161 = vst.msk [vmem:[#allocation2 + $0x40] sm:$0xff] %vm152, %v128
  %162 = vst.msk [vmem:[#allocation2 + $0x48] sm:$0xff] %vm152, %v129
  %163 = vst.msk [vmem:[#allocation2 + $0x50] sm:$0xff] %vm152, %v130
  %164 = vst.msk [vmem:[#allocation2 + $0x58] sm:$0xff] %vm152, %v131
  %165 = vst.msk [vmem:[#allocation2 + $0x60] sm:$0xff] %vm152, %v132
  %166 = vst.msk [vmem:[#allocation2 + $0x68] sm:$0xff] %vm152, %v133
  %167 = vst.msk [vmem:[#allocation2 + $0x70] sm:$0xff] %vm152, %v134
  %168 = vst.msk [vmem:[#allocation2 + $0x78] sm:$0xff] %vm152, %v135
  %185 = vrot.lane.b32.xlu0 %v136, 16
  %v186 = vpop.permute.xlu0 %185
  %187 = vrot.lane.b32.xlu0 %v137, 16
  %v188 = vpop.permute.xlu0 %187
  %189 = vrot.lane.b32.xlu0 %v138, 16
  %v190 = vpop.permute.xlu0 %189
  %191 = vrot.lane.b32.xlu0 %v139, 16
  %v192 = vpop.permute.xlu0 %191
  %193 = vrot.lane.b32.xlu0 %v140, 16
  %v194 = vpop.permute.xlu0 %193
  %195 = vrot.lane.b32.xlu0 %v141, 16
  %v196 = vpop.permute.xlu0 %195
  %197 = vrot.lane.b32.xlu0 %v142, 16
  %v198 = vpop.permute.xlu0 %197
  %199 = vrot.lane.b32.xlu0 %v143, 16
  %v200 = vpop.permute.xlu0 %199
  %201 = vrot.lane.b32.xlu0 %v144, 16
  %v202 = vpop.permute.xlu0 %201
  %203 = vrot.lane.b32.xlu0 %v145, 16
  %v204 = vpop.permute.xlu0 %203
  %205 = vrot.lane.b32.xlu0 %v146, 16
  %v206 = vpop.permute.xlu0 %205
  %207 = vrot.lane.b32.xlu0 %v147, 16
  %v208 = vpop.permute.xlu0 %207
  %209 = vrot.lane.b32.xlu0 %v148, 16
  %v210 = vpop.permute.xlu0 %209
  %211 = vrot.lane.b32.xlu0 %v149, 16
  %v212 = vpop.permute.xlu0 %211
  %213 = vrot.lane.b32.xlu0 %v150, 16
  %v214 = vpop.permute.xlu0 %213
  %215 = vrot.lane.b32.xlu0 %v151, 16
  %v216 = vpop.permute.xlu0 %215
  %vm233 = vcmask 261248
  %234 = vst.msk [vmem:[#allocation2] sm:$0xff] %vm233, %v186
  %235 = vst.msk [vmem:[#allocation2 + $0x8] sm:$0xff] %vm233, %v188
  %236 = vst.msk [vmem:[#allocation2 + $0x10] sm:$0xff] %vm233, %v190
  %237 = vst.msk [vmem:[#allocation2 + $0x18] sm:$0xff] %vm233, %v192
  %238 = vst.msk [vmem:[#allocation2 + $0x20] sm:$0xff] %vm233, %v194
  %239 = vst.msk [vmem:[#allocation2 + $0x28] sm:$0xff] %vm233, %v196
  %240 = vst.msk [vmem:[#allocation2 + $0x30] sm:$0xff] %vm233, %v198
  %241 = vst.msk [vmem:[#allocation2 + $0x38] sm:$0xff] %vm233, %v200
  %242 = vst.msk [vmem:[#allocation2 + $0x40] sm:$0xff] %vm233, %v202
  %243 = vst.msk [vmem:[#allocation2 + $0x48] sm:$0xff] %vm233, %v204
  %244 = vst.msk [vmem:[#allocation2 + $0x50] sm:$0xff] %vm233, %v206
  %245 = vst.msk [vmem:[#allocation2 + $0x58] sm:$0xff] %vm233, %v208
  %246 = vst.msk [vmem:[#allocation2 + $0x60] sm:$0xff] %vm233, %v210
  %247 = vst.msk [vmem:[#allocation2 + $0x68] sm:$0xff] %vm233, %v212
  %248 = vst.msk [vmem:[#allocation2 + $0x70] sm:$0xff] %vm233, %v214
  %249 = vst.msk [vmem:[#allocation2 + $0x78] sm:$0xff] %vm233, %v216
  %v250 = vmul.f32 %v120, %v120
  %v251 = vmul.f32 %v121, %v121
  %v252 = vmul.f32 %v122, %v122
  %v253 = vmul.f32 %v123, %v123
  %v254 = vmul.f32 %v124, %v124
  %v255 = vmul.f32 %v125, %v125
  %v256 = vmul.f32 %v126, %v126
  %v257 = vmul.f32 %v127, %v127
  %v258 = vmul.f32 %v128, %v128
  %v259 = vmul.f32 %v129, %v129
  %v260 = vmul.f32 %v130, %v130
  %v261 = vmul.f32 %v131, %v131
  %v262 = vmul.f32 %v132, %v132
  %v263 = vmul.f32 %v133, %v133
  %v264 = vmul.f32 %v134, %v134
  %v265 = vmul.f32 %v135, %v135
  %282 = vrot.lane.b32.xlu0 %v250, 32
  %v283 = vpop.permute.xlu0 %282
  %284 = vrot.lane.b32.xlu0 %v251, 32
  %v285 = vpop.permute.xlu0 %284
  %286 = vrot.lane.b32.xlu0 %v252, 32
  %v287 = vpop.permute.xlu0 %286
  %288 = vrot.lane.b32.xlu0 %v253, 32
  %v289 = vpop.permute.xlu0 %288
  %290 = vrot.lane.b32.xlu0 %v254, 32
  %v291 = vpop.permute.xlu0 %290
  %292 = vrot.lane.b32.xlu0 %v255, 32
  %v293 = vpop.permute.xlu0 %292
  %294 = vrot.lane.b32.xlu0 %v256, 32
  %v295 = vpop.permute.xlu0 %294
  %296 = vrot.lane.b32.xlu0 %v257, 32
  %v297 = vpop.permute.xlu0 %296
  %298 = vrot.lane.b32.xlu0 %v258, 32
  %v299 = vpop.permute.xlu0 %298
  %300 = vrot.lane.b32.xlu0 %v259, 32
  %v301 = vpop.permute.xlu0 %300
  %302 = vrot.lane.b32.xlu0 %v260, 32
  %v303 = vpop.permute.xlu0 %302
  %304 = vrot.lane.b32.xlu0 %v261, 32
  %v305 = vpop.permute.xlu0 %304
  %306 = vrot.lane.b32.xlu0 %v262, 32
  %v307 = vpop.permute.xlu0 %306
  %308 = vrot.lane.b32.xlu0 %v263, 32
  %v309 = vpop.permute.xlu0 %308
  %310 = vrot.lane.b32.xlu0 %v264, 32
  %v311 = vpop.permute.xlu0 %310
  %312 = vrot.lane.b32.xlu0 %v265, 32
  %v313 = vpop.permute.xlu0 %312
  %vm330 = vcmask 392448
  %331 = vst.msk [vmem:[#allocation2] sm:$0xff] %vm330, %v283
  %332 = vst.msk [vmem:[#allocation2 + $0x8] sm:$0xff] %vm330, %v285
  %333 = vst.msk [vmem:[#allocation2 + $0x10] sm:$0xff] %vm330, %v287
  %334 = vst.msk [vmem:[#allocation2 + $0x18] sm:$0xff] %vm330, %v289
  %335 = vst.msk [vmem:[#allocation2 + $0x20] sm:$0xff] %vm330, %v291
  %336 = vst.msk [vmem:[#allocation2 + $0x28] sm:$0xff] %vm330, %v293
  %337 = vst.msk [vmem:[#allocation2 + $0x30] sm:$0xff] %vm330, %v295
  %338 = vst.msk [vmem:[#allocation2 + $0x38] sm:$0xff] %vm330, %v297
  %339 = vst.msk [vmem:[#allocation2 + $0x40] sm:$0xff] %vm330, %v299
  %340 = vst.msk [vmem:[#allocation2 + $0x48] sm:$0xff] %vm330, %v301
  %341 = vst.msk [vmem:[#allocation2 + $0x50] sm:$0xff] %vm330, %v303
  %342 = vst.msk [vmem:[#allocation2 + $0x58] sm:$0xff] %vm330, %v305
  %343 = vst.msk [vmem:[#allocation2 + $0x60] sm:$0xff] %vm330, %v307
  %344 = vst.msk [vmem:[#allocation2 + $0x68] sm:$0xff] %vm330, %v309
  %345 = vst.msk [vmem:[#allocation2 + $0x70] sm:$0xff] %vm330, %v311
  %346 = vst.msk [vmem:[#allocation2 + $0x78] sm:$0xff] %vm330, %v313
  %v347 = vmul.f32 %v136, %v136
  %v348 = vmul.f32 %v137, %v137
  %v349 = vmul.f32 %v138, %v138
  %v350 = vmul.f32 %v139, %v139
  %v351 = vmul.f32 %v140, %v140
  %v352 = vmul.f32 %v141, %v141
  %v353 = vmul.f32 %v142, %v142
  %v354 = vmul.f32 %v143, %v143
  %v355 = vmul.f32 %v144, %v144
  %v356 = vmul.f32 %v145, %v145
  %v357 = vmul.f32 %v146, %v146
  %v358 = vmul.f32 %v147, %v147
  %v359 = vmul.f32 %v148, %v148
  %v360 = vmul.f32 %v149, %v149
  %v361 = vmul.f32 %v150, %v150
  %v362 = vmul.f32 %v151, %v151
  %379 = vrot.lane.b32.xlu0 %v347, 48
  %v380 = vpop.permute.xlu0 %379
  %381 = vrot.lane.b32.xlu0 %v348, 48
  %v382 = vpop.permute.xlu0 %381
  %383 = vrot.lane.b32.xlu0 %v349, 48
  %v384 = vpop.permute.xlu0 %383
  %385 = vrot.lane.b32.xlu0 %v350, 48
  %v386 = vpop.permute.xlu0 %385
  %387 = vrot.lane.b32.xlu0 %v351, 48
  %v388 = vpop.permute.xlu0 %387
  %389 = vrot.lane.b32.xlu0 %v352, 48
  %v390 = vpop.permute.xlu0 %389
  %391 = vrot.lane.b32.xlu0 %v353, 48
  %v392 = vpop.permute.xlu0 %391
  %393 = vrot.lane.b32.xlu0 %v354, 48
  %v394 = vpop.permute.xlu0 %393
  %395 = vrot.lane.b32.xlu0 %v355, 48
  %v396 = vpop.permute.xlu0 %395
  %397 = vrot.lane.b32.xlu0 %v356, 48
  %v398 = vpop.permute.xlu0 %397
  %399 = vrot.lane.b32.xlu0 %v357, 48
  %v400 = vpop.permute.xlu0 %399
  %401 = vrot.lane.b32.xlu0 %v358, 48
  %v402 = vpop.permute.xlu0 %401
  %403 = vrot.lane.b32.xlu0 %v359, 48
  %v404 = vpop.permute.xlu0 %403
  %405 = vrot.lane.b32.xlu0 %v360, 48
  %v406 = vpop.permute.xlu0 %405
  %407 = vrot.lane.b32.xlu0 %v361, 48
  %v408 = vpop.permute.xlu0 %407
  %409 = vrot.lane.b32.xlu0 %v362, 48
  %v410 = vpop.permute.xlu0 %409
  %vm427 = vcmask 523648
  %428 = vst.msk [vmem:[#allocation2] sm:$0xff] %vm427, %v380
  %429 = vst.msk [vmem:[#allocation2 + $0x8] sm:$0xff] %vm427, %v382
  %430 = vst.msk [vmem:[#allocation2 + $0x10] sm:$0xff] %vm427, %v384
  %431 = vst.msk [vmem:[#allocation2 + $0x18] sm:$0xff] %vm427, %v386
  %432 = vst.msk [vmem:[#allocation2 + $0x20] sm:$0xff] %vm427, %v388
  %433 = vst.msk [vmem:[#allocation2 + $0x28] sm:$0xff] %vm427, %v390
  %434 = vst.msk [vmem:[#allocation2 + $0x30] sm:$0xff] %vm427, %v392
  %435 = vst.msk [vmem:[#allocation2 + $0x38] sm:$0xff] %vm427, %v394
  %436 = vst.msk [vmem:[#allocation2 + $0x40] sm:$0xff] %vm427, %v396
  %437 = vst.msk [vmem:[#allocation2 + $0x48] sm:$0xff] %vm427, %v398
  %438 = vst.msk [vmem:[#allocation2 + $0x50] sm:$0xff] %vm427, %v400
  %439 = vst.msk [vmem:[#allocation2 + $0x58] sm:$0xff] %vm427, %v402
  %440 = vst.msk [vmem:[#allocation2 + $0x60] sm:$0xff] %vm427, %v404
  %441 = vst.msk [vmem:[#allocation2 + $0x68] sm:$0xff] %vm427, %v406
  %442 = vst.msk [vmem:[#allocation2 + $0x70] sm:$0xff] %vm427, %v408
  %443 = vst.msk [vmem:[#allocation2 + $0x78] sm:$0xff] %vm427, %v410
  %v444 = vmul.f32 %v120, %v136
  %v445 = vmul.f32 %v121, %v137
  %v446 = vmul.f32 %v122, %v138
  %v447 = vmul.f32 %v123, %v139
  %v448 = vmul.f32 %v124, %v140
  %v449 = vmul.f32 %v125, %v141
  %v450 = vmul.f32 %v126, %v142
  %v451 = vmul.f32 %v127, %v143
  %v452 = vmul.f32 %v128, %v144
  %v453 = vmul.f32 %v129, %v145
  %v454 = vmul.f32 %v130, %v146
  %v455 = vmul.f32 %v131, %v147
  %v456 = vmul.f32 %v132, %v148
  %v457 = vmul.f32 %v133, %v149
  %v458 = vmul.f32 %v134, %v150
  %v459 = vmul.f32 %v135, %v151
  %476 = vrot.lane.b32.xlu0 %v444, 64
  %v477 = vpop.permute.xlu0 %476
  %478 = vrot.lane.b32.xlu0 %v445, 64
  %v479 = vpop.permute.xlu0 %478
  %480 = vrot.lane.b32.xlu0 %v446, 64
  %v481 = vpop.permute.xlu0 %480
  %482 = vrot.lane.b32.xlu0 %v447, 64
  %v483 = vpop.permute.xlu0 %482
  %484 = vrot.lane.b32.xlu0 %v448, 64
  %v485 = vpop.permute.xlu0 %484
  %486 = vrot.lane.b32.xlu0 %v449, 64
  %v487 = vpop.permute.xlu0 %486
  %488 = vrot.lane.b32.xlu0 %v450, 64
  %v489 = vpop.permute.xlu0 %488
  %490 = vrot.lane.b32.xlu0 %v451, 64
  %v491 = vpop.permute.xlu0 %490
  %492 = vrot.lane.b32.xlu0 %v452, 64
  %v493 = vpop.permute.xlu0 %492
  %494 = vrot.lane.b32.xlu0 %v453, 64
  %v495 = vpop.permute.xlu0 %494
  %496 = vrot.lane.b32.xlu0 %v454, 64
  %v497 = vpop.permute.xlu0 %496
  %498 = vrot.lane.b32.xlu0 %v455, 64
  %v499 = vpop.permute.xlu0 %498
  %500 = vrot.lane.b32.xlu0 %v456, 64
  %v501 = vpop.permute.xlu0 %500
  %502 = vrot.lane.b32.xlu0 %v457, 64
  %v503 = vpop.permute.xlu0 %502
  %504 = vrot.lane.b32.xlu0 %v458, 64
  %v505 = vpop.permute.xlu0 %504
  %506 = vrot.lane.b32.xlu0 %v459, 64
  %v507 = vpop.permute.xlu0 %506
  %vm524 = vcmask 654848
  %525 = vst.msk [vmem:[#allocation2] sm:$0xff] %vm524, %v477
  %526 = vst.msk [vmem:[#allocation2 + $0x8] sm:$0xff] %vm524, %v479
  %527 = vst.msk [vmem:[#allocation2 + $0x10] sm:$0xff] %vm524, %v481
  %528 = vst.msk [vmem:[#allocation2 + $0x18] sm:$0xff] %vm524, %v483
  %529 = vst.msk [vmem:[#allocation2 + $0x20] sm:$0xff] %vm524, %v485
  %530 = vst.msk [vmem:[#allocation2 + $0x28] sm:$0xff] %vm524, %v487
  %531 = vst.msk [vmem:[#allocation2 + $0x30] sm:$0xff] %vm524, %v489
  %532 = vst.msk [vmem:[#allocation2 + $0x38] sm:$0xff] %vm524, %v491
  %533 = vst.msk [vmem:[#allocation2 + $0x40] sm:$0xff] %vm524, %v493
  %534 = vst.msk [vmem:[#allocation2 + $0x48] sm:$0xff] %vm524, %v495
  %535 = vst.msk [vmem:[#allocation2 + $0x50] sm:$0xff] %vm524, %v497
  %536 = vst.msk [vmem:[#allocation2 + $0x58] sm:$0xff] %vm524, %v499
  %537 = vst.msk [vmem:[#allocation2 + $0x60] sm:$0xff] %vm524, %v501
  %538 = vst.msk [vmem:[#allocation2 + $0x68] sm:$0xff] %vm524, %v503
  %539 = vst.msk [vmem:[#allocation2 + $0x70] sm:$0xff] %vm524, %v505
  %540 = vst.msk [vmem:[#allocation2 + $0x78] sm:$0xff] %vm524, %v507
  %v541 = vld [vmem:[#allocation2] sm:$0xff]
  %v542 = vld [vmem:[#allocation2 + $0x8] sm:$0xff]
  %v543 = vld [vmem:[#allocation2 + $0x10] sm:$0xff]
  %v544 = vld [vmem:[#allocation2 + $0x18] sm:$0xff]
  %v545 = vld [vmem:[#allocation2 + $0x20] sm:$0xff]
  %v546 = vld [vmem:[#allocation2 + $0x28] sm:$0xff]
  %v547 = vld [vmem:[#allocation2 + $0x30] sm:$0xff]
  %v548 = vld [vmem:[#allocation2 + $0x38] sm:$0xff]
  %v549 = vld [vmem:[#allocation2 + $0x40] sm:$0xff]
  %v550 = vld [vmem:[#allocation2 + $0x48] sm:$0xff]
  %v551 = vld [vmem:[#allocation2 + $0x50] sm:$0xff]
  %v552 = vld [vmem:[#allocation2 + $0x58] sm:$0xff]
  %v553 = vld [vmem:[#allocation2 + $0x60] sm:$0xff]
  %v554 = vld [vmem:[#allocation2 + $0x68] sm:$0xff]
  %v555 = vld [vmem:[#allocation2 + $0x70] sm:$0xff]
  %v556 = vld [vmem:[#allocation2 + $0x78] sm:$0xff]
  %v557 = vld [vmem:[%s3] sm:$0xff]
  %v558 = vld [vmem:[%s3 + $0x8] sm:$0xff]
  %v559 = vld [vmem:[%s3 + $0x10] sm:$0xff]
  %v560 = vld [vmem:[%s3 + $0x18] sm:$0xff]
  %v561 = vld [vmem:[%s3 + $0x20] sm:$0xff]
  %v562 = vld [vmem:[%s3 + $0x28] sm:$0xff]
  %v563 = vld [vmem:[%s3 + $0x30] sm:$0xff]
  %v564 = vld [vmem:[%s3 + $0x38] sm:$0xff]
  %v565 = vld [vmem:[%s3 + $0x40] sm:$0xff]
  %v566 = vld [vmem:[%s3 + $0x48] sm:$0xff]
  %vm567 = vcmask 654336
  %v569 = vsel %vm567, %v541, 0
  %v572 = vsel %vm567, %v542, 0
  %v575 = vsel %vm567, %v543, 0
  %v578 = vsel %vm567, %v544, 0
  %v581 = vsel %vm567, %v545, 0
  %v584 = vsel %vm567, %v546, 0
  %v587 = vsel %vm567, %v547, 0
  %v590 = vsel %vm567, %v548, 0
  %v593 = vsel %vm567, %v549, 0
  %v596 = vsel %vm567, %v550, 0
  %v599 = vsel %vm567, %v551, 0
  %v602 = vsel %vm567, %v552, 0
  %v605 = vsel %vm567, %v553, 0
  %v608 = vsel %vm567, %v554, 0
  %v611 = vsel %vm567, %v555, 0
  %v614 = vsel %vm567, %v556, 0
  %616 = vmatpush.msra.mxu0 0.0
  %617 = vmatpush.msra.mxu0 0.0
  %618 = vmatpush.msra.mxu0 0.0
  %619 = vmatpush.msra.mxu0 0.0
  %620 = vmatpush.msra.mxu0 0.0
  %621 = vmatpush.msra.mxu0 0.0
  %622 = vmatpush.msra.mxu0 %v566
  %623 = vmatpush.msra.mxu0 %v565
  %624 = vmatpush.msra.mxu0 %v564
  %625 = vmatpush.msra.mxu0 %v563
  %626 = vmatpush.msra.mxu0 %v562
  %627 = vmatpush.msra.mxu0 %v561
  %628 = vmatpush.msra.mxu0 %v560
  %629 = vmatpush.msra.mxu0 %v559
  %630 = vmatpush.msra.mxu0 %v558
  %631 = vmatpush.msra.mxu0 %v557
  %632 = vmatmul.f32.gmra.mxu0 %v569
  %v633 = vpop.f32.mrf.mxu0
  %v634 = vadd.f32 0.0, %v633
  %635 = vmatmul.f32.gmra.mxu0 %v572
  %v636 = vpop.f32.mrf.mxu0
  %v637 = vadd.f32 0.0, %v636
  %638 = vmatmul.f32.gmra.mxu0 %v575
  %v639 = vpop.f32.mrf.mxu0
  %v640 = vadd.f32 0.0, %v639
  %641 = vmatmul.f32.gmra.mxu0 %v578
  %v642 = vpop.f32.mrf.mxu0
  %v643 = vadd.f32 0.0, %v642
  %644 = vmatmul.f32.gmra.mxu0 %v581
  %v645 = vpop.f32.mrf.mxu0
  %v646 = vadd.f32 0.0, %v645
  %647 = vmatmul.f32.gmra.mxu0 %v584
  %v648 = vpop.f32.mrf.mxu0
  %v649 = vadd.f32 0.0, %v648
  %650 = vmatmul.f32.gmra.mxu0 %v587
  %v651 = vpop.f32.mrf.mxu0
  %v652 = vadd.f32 0.0, %v651
  %653 = vmatmul.f32.gmra.mxu0 %v590
  %v654 = vpop.f32.mrf.mxu0
  %v655 = vadd.f32 0.0, %v654
  %656 = vmatmul.f32.gmra.mxu0 %v593
  %v657 = vpop.f32.mrf.mxu0
  %v658 = vadd.f32 0.0, %v657
  %659 = vmatmul.f32.gmra.mxu0 %v596
  %v660 = vpop.f32.mrf.mxu0
  %v661 = vadd.f32 0.0, %v660
  %662 = vmatmul.f32.gmra.mxu0 %v599
  %v663 = vpop.f32.mrf.mxu0
  %v664 = vadd.f32 0.0, %v663
  %665 = vmatmul.f32.gmra.mxu0 %v602
  %v666 = vpop.f32.mrf.mxu0
  %v667 = vadd.f32 0.0, %v666
  %668 = vmatmul.f32.gmra.mxu0 %v605
  %v669 = vpop.f32.mrf.mxu0
  %v670 = vadd.f32 0.0, %v669
  %671 = vmatmul.f32.gmra.mxu0 %v608
  %v672 = vpop.f32.mrf.mxu0
  %v673 = vadd.f32 0.0, %v672
  %674 = vmatmul.f32.gmra.mxu0 %v611
  %v675 = vpop.f32.mrf.mxu0
  %v676 = vadd.f32 0.0, %v675
  %677 = vmatmul.f32.gmra.mxu0 %v614
  %v678 = vpop.f32.mrf.mxu0
  %v679 = vadd.f32 0.0, %v678
  %680 = vdwg.mxu0
  %v681 = vld [vmem:[%s2] sm:$0xff]
  %v682 = vld [vmem:[%s2 + $0x8] sm:$0xff]
  %v683 = vld [vmem:[%s2 + $0x10] sm:$0xff]
  %v684 = vld [vmem:[%s2 + $0x18] sm:$0xff]
  %v685 = vld [vmem:[%s2 + $0x20] sm:$0xff]
  %v686 = vld [vmem:[%s2 + $0x28] sm:$0xff]
  %v687 = vld [vmem:[%s2 + $0x30] sm:$0xff]
  %v688 = vld [vmem:[%s2 + $0x38] sm:$0xff]
  %v689 = vld [vmem:[%s2 + $0x40] sm:$0xff]
  %v690 = vld [vmem:[%s2 + $0x48] sm:$0xff]
  %v691 = vld [vmem:[%s2 + $0x50] sm:$0xff]
  %v692 = vld [vmem:[%s2 + $0x58] sm:$0xff]
  %v693 = vld [vmem:[%s2 + $0x60] sm:$0xff]
  %v694 = vld [vmem:[%s2 + $0x68] sm:$0xff]
  %v695 = vld [vmem:[%s2 + $0x70] sm:$0xff]
  %v696 = vld [vmem:[%s2 + $0x78] sm:$0xff]
  %697 = vmatpush.msra.mxu0 %v679
  %698 = vmatpush.msra.mxu0 %v676
  %699 = vmatpush.msra.mxu0 %v673
  %700 = vmatpush.msra.mxu0 %v670
  %701 = vmatpush.msra.mxu0 %v667
  %702 = vmatpush.msra.mxu0 %v664
  %703 = vmatpush.msra.mxu0 %v661
  %704 = vmatpush.msra.mxu0 %v658
  %705 = vmatpush.msra.mxu0 %v655
  %706 = vmatpush.msra.mxu0 %v652
  %707 = vmatpush.msra.mxu0 %v649
  %708 = vmatpush.msra.mxu0 %v646
  %709 = vmatpush.msra.mxu0 %v643
  %710 = vmatpush.msra.mxu0 %v640
  %711 = vmatpush.msra.mxu0 %v637
  %712 = vmatpush.msra.mxu0 %v634
  %713 = vmatmul.f32.gmra.mxu0 %v681
  %v714 = vpop.f32.mrf.mxu0
  %v715 = vadd.f32 0.0, %v714
  %716 = vmatmul.f32.gmra.mxu0 %v682
  %v717 = vpop.f32.mrf.mxu0
  %v718 = vadd.f32 0.0, %v717
  %719 = vmatmul.f32.gmra.mxu0 %v683
  %v720 = vpop.f32.mrf.mxu0
  %v721 = vadd.f32 0.0, %v720
  %722 = vmatmul.f32.gmra.mxu0 %v684
  %v723 = vpop.f32.mrf.mxu0
  %v724 = vadd.f32 0.0, %v723
  %725 = vmatmul.f32.gmra.mxu0 %v685
  %v726 = vpop.f32.mrf.mxu0
  %v727 = vadd.f32 0.0, %v726
  %728 = vmatmul.f32.gmra.mxu0 %v686
  %v729 = vpop.f32.mrf.mxu0
  %v730 = vadd.f32 0.0, %v729
  %731 = vmatmul.f32.gmra.mxu0 %v687
  %v732 = vpop.f32.mrf.mxu0
  %v733 = vadd.f32 0.0, %v732
  %734 = vmatmul.f32.gmra.mxu0 %v688
  %v735 = vpop.f32.mrf.mxu0
  %v736 = vadd.f32 0.0, %v735
  %737 = vmatmul.f32.gmra.mxu0 %v689
  %v738 = vpop.f32.mrf.mxu0
  %v739 = vadd.f32 0.0, %v738
  %740 = vmatmul.f32.gmra.mxu0 %v690
  %v741 = vpop.f32.mrf.mxu0
  %v742 = vadd.f32 0.0, %v741
  %743 = vmatmul.f32.gmra.mxu0 %v691
  %v744 = vpop.f32.mrf.mxu0
  %v745 = vadd.f32 0.0, %v744
  %746 = vmatmul.f32.gmra.mxu0 %v692
  %v747 = vpop.f32.mrf.mxu0
  %v748 = vadd.f32 0.0, %v747
  %749 = vmatmul.f32.gmra.mxu0 %v693
  %v750 = vpop.f32.mrf.mxu0
  %v751 = vadd.f32 0.0, %v750
  %752 = vmatmul.f32.gmra.mxu0 %v694
  %v753 = vpop.f32.mrf.mxu0
  %v754 = vadd.f32 0.0, %v753
  %755 = vmatmul.f32.gmra.mxu0 %v695
  %v756 = vpop.f32.mrf.mxu0
  %v757 = vadd.f32 0.0, %v756
  %758 = vmatmul.f32.gmra.mxu0 %v696
  %v759 = vpop.f32.mrf.mxu0
  %v760 = vadd.f32 0.0, %v759
  %761 = vdwg.mxu0
  %762 = vst.msk [vmem:[#allocation3] sm:$0xff] %vm567, %v715
  %763 = vst.msk [vmem:[#allocation3 + $0x8] sm:$0xff] %vm567, %v718
  %764 = vst.msk [vmem:[#allocation3 + $0x10] sm:$0xff] %vm567, %v721
  %765 = vst.msk [vmem:[#allocation3 + $0x18] sm:$0xff] %vm567, %v724
  %766 = vst.msk [vmem:[#allocation3 + $0x20] sm:$0xff] %vm567, %v727
  %767 = vst.msk [vmem:[#allocation3 + $0x28] sm:$0xff] %vm567, %v730
  %768 = vst.msk [vmem:[#allocation3 + $0x30] sm:$0xff] %vm567, %v733
  %769 = vst.msk [vmem:[#allocation3 + $0x38] sm:$0xff] %vm567, %v736
  %770 = vst.msk [vmem:[#allocation3 + $0x40] sm:$0xff] %vm567, %v739
  %771 = vst.msk [vmem:[#allocation3 + $0x48] sm:$0xff] %vm567, %v742
  %772 = vst.msk [vmem:[#allocation3 + $0x50] sm:$0xff] %vm567, %v745
  %773 = vst.msk [vmem:[#allocation3 + $0x58] sm:$0xff] %vm567, %v748
  %774 = vst.msk [vmem:[#allocation3 + $0x60] sm:$0xff] %vm567, %v751
  %775 = vst.msk [vmem:[#allocation3 + $0x68] sm:$0xff] %vm567, %v754
  %776 = vst.msk [vmem:[#allocation3 + $0x70] sm:$0xff] %vm567, %v757
  %777 = vst.msk [vmem:[#allocation3 + $0x78] sm:$0xff] %vm567, %v760
  %v778 = vld [vmem:[#allocation3] sm:$0xff]
  %v779 = vld [vmem:[#allocation3 + $0x8] sm:$0xff]
  %v780 = vld [vmem:[#allocation3 + $0x10] sm:$0xff]
  %v781 = vld [vmem:[#allocation3 + $0x18] sm:$0xff]
  %v782 = vld [vmem:[#allocation3 + $0x20] sm:$0xff]
  %v783 = vld [vmem:[#allocation3 + $0x28] sm:$0xff]
  %v784 = vld [vmem:[#allocation3 + $0x30] sm:$0xff]
  %v785 = vld [vmem:[#allocation3 + $0x38] sm:$0xff]
  %v786 = vld [vmem:[#allocation3 + $0x40] sm:$0xff]
  %v787 = vld [vmem:[#allocation3 + $0x48] sm:$0xff]
  %v788 = vld [vmem:[#allocation3 + $0x50] sm:$0xff]
  %v789 = vld [vmem:[#allocation3 + $0x58] sm:$0xff]
  %v790 = vld [vmem:[#allocation3 + $0x60] sm:$0xff]
  %v791 = vld [vmem:[#allocation3 + $0x68] sm:$0xff]
  %v792 = vld [vmem:[#allocation3 + $0x70] sm:$0xff]
  %v793 = vld [vmem:[#allocation3 + $0x78] sm:$0xff]
  %v794 = vmul.f32 %v778, %v778
  %v795 = vmul.f32 %v779, %v779
  %v796 = vmul.f32 %v780, %v780
  %v797 = vmul.f32 %v781, %v781
  %v798 = vmul.f32 %v782, %v782
  %v799 = vmul.f32 %v783, %v783
  %v800 = vmul.f32 %v784, %v784
  %v801 = vmul.f32 %v785, %v785
  %v802 = vmul.f32 %v786, %v786
  %v803 = vmul.f32 %v787, %v787
  %v804 = vmul.f32 %v788, %v788
  %v805 = vmul.f32 %v789, %v789
  %v806 = vmul.f32 %v790, %v790
  %v807 = vmul.f32 %v791, %v791
  %v808 = vmul.f32 %v792, %v792
  %v809 = vmul.f32 %v793, %v793
  %826 = vrot.lane.b32.xlu0 %v778, 112
  %v827 = vpop.permute.xlu0 %826
  %828 = vrot.lane.b32.xlu0 %v779, 112
  %v829 = vpop.permute.xlu0 %828
  %830 = vrot.lane.b32.xlu0 %v780, 112
  %v831 = vpop.permute.xlu0 %830
  %832 = vrot.lane.b32.xlu0 %v781, 112
  %v833 = vpop.permute.xlu0 %832
  %834 = vrot.lane.b32.xlu0 %v782, 112
  %v835 = vpop.permute.xlu0 %834
  %836 = vrot.lane.b32.xlu0 %v783, 112
  %v837 = vpop.permute.xlu0 %836
  %838 = vrot.lane.b32.xlu0 %v784, 112
  %v839 = vpop.permute.xlu0 %838
  %840 = vrot.lane.b32.xlu0 %v785, 112
  %v841 = vpop.permute.xlu0 %840
  %842 = vrot.lane.b32.xlu0 %v786, 112
  %v843 = vpop.permute.xlu0 %842
  %844 = vrot.lane.b32.xlu0 %v787, 112
  %v845 = vpop.permute.xlu0 %844
  %846 = vrot.lane.b32.xlu0 %v788, 112
  %v847 = vpop.permute.xlu0 %846
  %848 = vrot.lane.b32.xlu0 %v789, 112
  %v849 = vpop.permute.xlu0 %848
  %850 = vrot.lane.b32.xlu0 %v790, 112
  %v851 = vpop.permute.xlu0 %850
  %852 = vrot.lane.b32.xlu0 %v791, 112
  %v853 = vpop.permute.xlu0 %852
  %854 = vrot.lane.b32.xlu0 %v792, 112
  %v855 = vpop.permute.xlu0 %854
  %856 = vrot.lane.b32.xlu0 %v793, 112
  %v857 = vpop.permute.xlu0 %856
  %v874 = vmul.f32 %v778, %v827
  %v875 = vmul.f32 %v779, %v829
  %v876 = vmul.f32 %v780, %v831
  %v877 = vmul.f32 %v781, %v833
  %v878 = vmul.f32 %v782, %v835
  %v879 = vmul.f32 %v783, %v837
  %v880 = vmul.f32 %v784, %v839
  %v881 = vmul.f32 %v785, %v841
  %v882 = vmul.f32 %v786, %v843
  %v883 = vmul.f32 %v787, %v845
  %v884 = vmul.f32 %v788, %v847
  %v885 = vmul.f32 %v789, %v849
  %v886 = vmul.f32 %v790, %v851
  %v887 = vmul.f32 %v791, %v853
  %v888 = vmul.f32 %v792, %v855
  %v889 = vmul.f32 %v793, %v857
  %906 = vrot.lane.b32.xlu0 %v794, 32
  %v907 = vpop.permute.xlu0 %906
  %908 = vrot.lane.b32.xlu0 %v795, 32
  %v909 = vpop.permute.xlu0 %908
  %910 = vrot.lane.b32.xlu0 %v796, 32
  %v911 = vpop.permute.xlu0 %910
  %912 = vrot.lane.b32.xlu0 %v797, 32
  %v913 = vpop.permute.xlu0 %912
  %914 = vrot.lane.b32.xlu0 %v798, 32
  %v915 = vpop.permute.xlu0 %914
  %916 = vrot.lane.b32.xlu0 %v799, 32
  %v917 = vpop.permute.xlu0 %916
  %918 = vrot.lane.b32.xlu0 %v800, 32
  %v919 = vpop.permute.xlu0 %918
  %920 = vrot.lane.b32.xlu0 %v801, 32
  %v921 = vpop.permute.xlu0 %920
  %922 = vrot.lane.b32.xlu0 %v802, 32
  %v923 = vpop.permute.xlu0 %922
  %924 = vrot.lane.b32.xlu0 %v803, 32
  %v925 = vpop.permute.xlu0 %924
  %926 = vrot.lane.b32.xlu0 %v804, 32
  %v927 = vpop.permute.xlu0 %926
  %928 = vrot.lane.b32.xlu0 %v805, 32
  %v929 = vpop.permute.xlu0 %928
  %930 = vrot.lane.b32.xlu0 %v806, 32
  %v931 = vpop.permute.xlu0 %930
  %932 = vrot.lane.b32.xlu0 %v807, 32
  %v933 = vpop.permute.xlu0 %932
  %934 = vrot.lane.b32.xlu0 %v808, 32
  %v935 = vpop.permute.xlu0 %934
  %936 = vrot.lane.b32.xlu0 %v809, 32
  %v937 = vpop.permute.xlu0 %936
  %v954 = vsub.f32 %v778, %v907
  %v955 = vsub.f32 %v779, %v909
  %v956 = vsub.f32 %v780, %v911
  %v957 = vsub.f32 %v781, %v913
  %v958 = vsub.f32 %v782, %v915
  %v959 = vsub.f32 %v783, %v917
  %v960 = vsub.f32 %v784, %v919
  %v961 = vsub.f32 %v785, %v921
  %v962 = vsub.f32 %v786, %v923
  %v963 = vsub.f32 %v787, %v925
  %v964 = vsub.f32 %v788, %v927
  %v965 = vsub.f32 %v789, %v929
  %v966 = vsub.f32 %v790, %v931
  %v967 = vsub.f32 %v791, %v933
  %v968 = vsub.f32 %v792, %v935
  %v969 = vsub.f32 %v793, %v937
  %986 = vrot.lane.b32.xlu0 %v874, 64
  %v987 = vpop.permute.xlu0 %986
  %988 = vrot.lane.b32.xlu0 %v875, 64
  %v989 = vpop.permute.xlu0 %988
  %990 = vrot.lane.b32.xlu0 %v876, 64
  %v991 = vpop.permute.xlu0 %990
  %992 = vrot.lane.b32.xlu0 %v877, 64
  %v993 = vpop.permute.xlu0 %992
  %994 = vrot.lane.b32.xlu0 %v878, 64
  %v995 = vpop.permute.xlu0 %994
  %996 = vrot.lane.b32.xlu0 %v879, 64
  %v997 = vpop.permute.xlu0 %996
  %998 = vrot.lane.b32.xlu0 %v880, 64
  %v999 = vpop.permute.xlu0 %998
  %1000 = vrot.lane.b32.xlu0 %v881, 64
  %v1001 = vpop.permute.xlu0 %1000
  %1002 = vrot.lane.b32.xlu0 %v882, 64
  %v1003 = vpop.permute.xlu0 %1002
  %1004 = vrot.lane.b32.xlu0 %v883, 64
  %v1005 = vpop.permute.xlu0 %1004
  %1006 = vrot.lane.b32.xlu0 %v884, 64
  %v1007 = vpop.permute.xlu0 %1006
  %1008 = vrot.lane.b32.xlu0 %v885, 64
  %v1009 = vpop.permute.xlu0 %1008
  %1010 = vrot.lane.b32.xlu0 %v886, 64
  %v1011 = vpop.permute.xlu0 %1010
  %1012 = vrot.lane.b32.xlu0 %v887, 64
  %v1013 = vpop.permute.xlu0 %1012
  %1014 = vrot.lane.b32.xlu0 %v888, 64
  %v1015 = vpop.permute.xlu0 %1014
  %1016 = vrot.lane.b32.xlu0 %v889, 64
  %v1017 = vpop.permute.xlu0 %1016
  %v1034 = vsub.f32 %v778, %v987
  %v1035 = vsub.f32 %v779, %v989
  %v1036 = vsub.f32 %v780, %v991
  %v1037 = vsub.f32 %v781, %v993
  %v1038 = vsub.f32 %v782, %v995
  %v1039 = vsub.f32 %v783, %v997
  %v1040 = vsub.f32 %v784, %v999
  %v1041 = vsub.f32 %v785, %v1001
  %v1042 = vsub.f32 %v786, %v1003
  %v1043 = vsub.f32 %v787, %v1005
  %v1044 = vsub.f32 %v788, %v1007
  %v1045 = vsub.f32 %v789, %v1009
  %v1046 = vsub.f32 %v790, %v1011
  %v1047 = vsub.f32 %v791, %v1013
  %v1048 = vsub.f32 %v792, %v1015
  %v1049 = vsub.f32 %v793, %v1017
  %v1050 = vmul.f32 %v874, 2.0
  %v1051 = vmul.f32 %v875, 2.0
  %v1052 = vmul.f32 %v876, 2.0
  %v1053 = vmul.f32 %v877, 2.0
  %v1054 = vmul.f32 %v878, 2.0
  %v1055 = vmul.f32 %v879, 2.0
  %v1056 = vmul.f32 %v880, 2.0
  %v1057 = vmul.f32 %v881, 2.0
  %v1058 = vmul.f32 %v882, 2.0
  %v1059 = vmul.f32 %v883, 2.0
  %v1060 = vmul.f32 %v884, 2.0
  %v1061 = vmul.f32 %v885, 2.0
  %v1062 = vmul.f32 %v886, 2.0
  %v1063 = vmul.f32 %v887, 2.0
  %v1064 = vmul.f32 %v888, 2.0
  %v1065 = vmul.f32 %v889, 2.0
  %v1066 = vadd.f32 %v1050, 0.0001
  %v1067 = vadd.f32 %v1051, 0.0001
  %v1068 = vadd.f32 %v1052, 0.0001
  %v1069 = vadd.f32 %v1053, 0.0001
  %v1070 = vadd.f32 %v1054, 0.0001
  %v1071 = vadd.f32 %v1055, 0.0001
  %v1072 = vadd.f32 %v1056, 0.0001
  %v1073 = vadd.f32 %v1057, 0.0001
  %v1074 = vadd.f32 %v1058, 0.0001
  %v1075 = vadd.f32 %v1059, 0.0001
  %v1076 = vadd.f32 %v1060, 0.0001
  %v1077 = vadd.f32 %v1061, 0.0001
  %v1078 = vadd.f32 %v1062, 0.0001
  %v1079 = vadd.f32 %v1063, 0.0001
  %v1080 = vadd.f32 %v1064, 0.0001
  %v1081 = vadd.f32 %v1065, 0.0001
  %v1082 = vmul.f32 %v1034, 2.0
  %v1083 = vmul.f32 %v1035, 2.0
  %v1084 = vmul.f32 %v1036, 2.0
  %v1085 = vmul.f32 %v1037, 2.0
  %v1086 = vmul.f32 %v1038, 2.0
  %v1087 = vmul.f32 %v1039, 2.0
  %v1088 = vmul.f32 %v1040, 2.0
  %v1089 = vmul.f32 %v1041, 2.0
  %v1090 = vmul.f32 %v1042, 2.0
  %v1091 = vmul.f32 %v1043, 2.0
  %v1092 = vmul.f32 %v1044, 2.0
  %v1093 = vmul.f32 %v1045, 2.0
  %v1094 = vmul.f32 %v1046, 2.0
  %v1095 = vmul.f32 %v1047, 2.0
  %v1096 = vmul.f32 %v1048, 2.0
  %v1097 = vmul.f32 %v1049, 2.0
  %v1098 = vadd.f32 %v1082, 0.0009
  %v1099 = vadd.f32 %v1083, 0.0009
  %v1100 = vadd.f32 %v1084, 0.0009
  %v1101 = vadd.f32 %v1085, 0.0009
  %v1102 = vadd.f32 %v1086, 0.0009
  %v1103 = vadd.f32 %v1087, 0.0009
  %v1104 = vadd.f32 %v1088, 0.0009
  %v1105 = vadd.f32 %v1089, 0.0009
  %v1106 = vadd.f32 %v1090, 0.0009
  %v1107 = vadd.f32 %v1091, 0.0009
  %v1108 = vadd.f32 %v1092, 0.0009
  %v1109 = vadd.f32 %v1093, 0.0009
  %v1110 = vadd.f32 %v1094, 0.0009
  %v1111 = vadd.f32 %v1095, 0.0009
  %v1112 = vadd.f32 %v1096, 0.0009
  %v1113 = vadd.f32 %v1097, 0.0009
  %1130 = vrot.lane.b32.xlu0 %v1098, 64
  %v1131 = vpop.permute.xlu0 %1130
  %1132 = vrot.lane.b32.xlu0 %v1099, 64
  %v1133 = vpop.permute.xlu0 %1132
  %1134 = vrot.lane.b32.xlu0 %v1100, 64
  %v1135 = vpop.permute.xlu0 %1134
  %1136 = vrot.lane.b32.xlu0 %v1101, 64
  %v1137 = vpop.permute.xlu0 %1136
  %1138 = vrot.lane.b32.xlu0 %v1102, 64
  %v1139 = vpop.permute.xlu0 %1138
  %1140 = vrot.lane.b32.xlu0 %v1103, 64
  %v1141 = vpop.permute.xlu0 %1140
  %1142 = vrot.lane.b32.xlu0 %v1104, 64
  %v1143 = vpop.permute.xlu0 %1142
  %1144 = vrot.lane.b32.xlu0 %v1105, 64
  %v1145 = vpop.permute.xlu0 %1144
  %1146 = vrot.lane.b32.xlu0 %v1106, 64
  %v1147 = vpop.permute.xlu0 %1146
  %1148 = vrot.lane.b32.xlu0 %v1107, 64
  %v1149 = vpop.permute.xlu0 %1148
  %1150 = vrot.lane.b32.xlu0 %v1108, 64
  %v1151 = vpop.permute.xlu0 %1150
  %1152 = vrot.lane.b32.xlu0 %v1109, 64
  %v1153 = vpop.permute.xlu0 %1152
  %1154 = vrot.lane.b32.xlu0 %v1110, 64
  %v1155 = vpop.permute.xlu0 %1154
  %1156 = vrot.lane.b32.xlu0 %v1111, 64
  %v1157 = vpop.permute.xlu0 %1156
  %1158 = vrot.lane.b32.xlu0 %v1112, 64
  %v1159 = vpop.permute.xlu0 %1158
  %1160 = vrot.lane.b32.xlu0 %v1113, 64
  %v1161 = vpop.permute.xlu0 %1160
  %v1178 = vmul.f32 %v1066, %v1131
  %v1179 = vmul.f32 %v1067, %v1133
  %v1180 = vmul.f32 %v1068, %v1135
  %v1181 = vmul.f32 %v1069, %v1137
  %v1182 = vmul.f32 %v1070, %v1139
  %v1183 = vmul.f32 %v1071, %v1141
  %v1184 = vmul.f32 %v1072, %v1143
  %v1185 = vmul.f32 %v1073, %v1145
  %v1186 = vmul.f32 %v1074, %v1147
  %v1187 = vmul.f32 %v1075, %v1149
  %v1188 = vmul.f32 %v1076, %v1151
  %v1189 = vmul.f32 %v1077, %v1153
  %v1190 = vmul.f32 %v1078, %v1155
  %v1191 = vmul.f32 %v1079, %v1157
  %v1192 = vmul.f32 %v1080, %v1159
  %v1193 = vmul.f32 %v1081, %v1161
  %1194 = vrot.lane.b32.xlu0 %v794, 112
  %v1195 = vpop.permute.xlu0 %1194
  %1196 = vrot.lane.b32.xlu0 %v795, 112
  %v1197 = vpop.permute.xlu0 %1196
  %1198 = vrot.lane.b32.xlu0 %v796, 112
  %v1199 = vpop.permute.xlu0 %1198
  %1200 = vrot.lane.b32.xlu0 %v797, 112
  %v1201 = vpop.permute.xlu0 %1200
  %1202 = vrot.lane.b32.xlu0 %v798, 112
  %v1203 = vpop.permute.xlu0 %1202
  %1204 = vrot.lane.b32.xlu0 %v799, 112
  %v1205 = vpop.permute.xlu0 %1204
  %1206 = vrot.lane.b32.xlu0 %v800, 112
  %v1207 = vpop.permute.xlu0 %1206
  %1208 = vrot.lane.b32.xlu0 %v801, 112
  %v1209 = vpop.permute.xlu0 %1208
  %1210 = vrot.lane.b32.xlu0 %v802, 112
  %v1211 = vpop.permute.xlu0 %1210
  %1212 = vrot.lane.b32.xlu0 %v803, 112
  %v1213 = vpop.permute.xlu0 %1212
  %1214 = vrot.lane.b32.xlu0 %v804, 112
  %v1215 = vpop.permute.xlu0 %1214
  %1216 = vrot.lane.b32.xlu0 %v805, 112
  %v1217 = vpop.permute.xlu0 %1216
  %1218 = vrot.lane.b32.xlu0 %v806, 112
  %v1219 = vpop.permute.xlu0 %1218
  %1220 = vrot.lane.b32.xlu0 %v807, 112
  %v1221 = vpop.permute.xlu0 %1220
  %1222 = vrot.lane.b32.xlu0 %v808, 112
  %v1223 = vpop.permute.xlu0 %1222
  %1224 = vrot.lane.b32.xlu0 %v809, 112
  %v1225 = vpop.permute.xlu0 %1224
  %v1242 = vadd.f32 %v794, %v1195
  %v1243 = vadd.f32 %v795, %v1197
  %v1244 = vadd.f32 %v796, %v1199
  %v1245 = vadd.f32 %v797, %v1201
  %v1246 = vadd.f32 %v798, %v1203
  %v1247 = vadd.f32 %v799, %v1205
  %v1248 = vadd.f32 %v800, %v1207
  %v1249 = vadd.f32 %v801, %v1209
  %v1250 = vadd.f32 %v802, %v1211
  %v1251 = vadd.f32 %v803, %v1213
  %v1252 = vadd.f32 %v804, %v1215
  %v1253 = vadd.f32 %v805, %v1217
  %v1254 = vadd.f32 %v806, %v1219
  %v1255 = vadd.f32 %v807, %v1221
  %v1256 = vadd.f32 %v808, %v1223
  %v1257 = vadd.f32 %v809, %v1225
  %v1258 = vadd.f32 %v1242, 0.0001
  %v1259 = vadd.f32 %v1243, 0.0001
  %v1260 = vadd.f32 %v1244, 0.0001
  %v1261 = vadd.f32 %v1245, 0.0001
  %v1262 = vadd.f32 %v1246, 0.0001
  %v1263 = vadd.f32 %v1247, 0.0001
  %v1264 = vadd.f32 %v1248, 0.0001
  %v1265 = vadd.f32 %v1249, 0.0001
  %v1266 = vadd.f32 %v1250, 0.0001
  %v1267 = vadd.f32 %v1251, 0.0001
  %v1268 = vadd.f32 %v1252, 0.0001
  %v1269 = vadd.f32 %v1253, 0.0001
  %v1270 = vadd.f32 %v1254, 0.0001
  %v1271 = vadd.f32 %v1255, 0.0001
  %v1272 = vadd.f32 %v1256, 0.0001
  %v1273 = vadd.f32 %v1257, 0.0001
  %1290 = vrot.lane.b32.xlu0 %v954, 112
  %v1291 = vpop.permute.xlu0 %1290
  %1292 = vrot.lane.b32.xlu0 %v955, 112
  %v1293 = vpop.permute.xlu0 %1292
  %1294 = vrot.lane.b32.xlu0 %v956, 112
  %v1295 = vpop.permute.xlu0 %1294
  %1296 = vrot.lane.b32.xlu0 %v957, 112
  %v1297 = vpop.permute.xlu0 %1296
  %1298 = vrot.lane.b32.xlu0 %v958, 112
  %v1299 = vpop.permute.xlu0 %1298
  %1300 = vrot.lane.b32.xlu0 %v959, 112
  %v1301 = vpop.permute.xlu0 %1300
  %1302 = vrot.lane.b32.xlu0 %v960, 112
  %v1303 = vpop.permute.xlu0 %1302
  %1304 = vrot.lane.b32.xlu0 %v961, 112
  %v1305 = vpop.permute.xlu0 %1304
  %1306 = vrot.lane.b32.xlu0 %v962, 112
  %v1307 = vpop.permute.xlu0 %1306
  %1308 = vrot.lane.b32.xlu0 %v963, 112
  %v1309 = vpop.permute.xlu0 %1308
  %1310 = vrot.lane.b32.xlu0 %v964, 112
  %v1311 = vpop.permute.xlu0 %1310
  %1312 = vrot.lane.b32.xlu0 %v965, 112
  %v1313 = vpop.permute.xlu0 %1312
  %1314 = vrot.lane.b32.xlu0 %v966, 112
  %v1315 = vpop.permute.xlu0 %1314
  %1316 = vrot.lane.b32.xlu0 %v967, 112
  %v1317 = vpop.permute.xlu0 %1316
  %1318 = vrot.lane.b32.xlu0 %v968, 112
  %v1319 = vpop.permute.xlu0 %1318
  %1320 = vrot.lane.b32.xlu0 %v969, 112
  %v1321 = vpop.permute.xlu0 %1320
  %v1338 = vadd.f32 %v954, %v1291
  %v1339 = vadd.f32 %v955, %v1293
  %v1340 = vadd.f32 %v956, %v1295
  %v1341 = vadd.f32 %v957, %v1297
  %v1342 = vadd.f32 %v958, %v1299
  %v1343 = vadd.f32 %v959, %v1301
  %v1344 = vadd.f32 %v960, %v1303
  %v1345 = vadd.f32 %v961, %v1305
  %v1346 = vadd.f32 %v962, %v1307
  %v1347 = vadd.f32 %v963, %v1309
  %v1348 = vadd.f32 %v964, %v1311
  %v1349 = vadd.f32 %v965, %v1313
  %v1350 = vadd.f32 %v966, %v1315
  %v1351 = vadd.f32 %v967, %v1317
  %v1352 = vadd.f32 %v968, %v1319
  %v1353 = vadd.f32 %v969, %v1321
  %v1354 = vadd.f32 %v1338, 0.0009
  %v1355 = vadd.f32 %v1339, 0.0009
  %v1356 = vadd.f32 %v1340, 0.0009
  %v1357 = vadd.f32 %v1341, 0.0009
  %v1358 = vadd.f32 %v1342, 0.0009
  %v1359 = vadd.f32 %v1343, 0.0009
  %v1360 = vadd.f32 %v1344, 0.0009
  %v1361 = vadd.f32 %v1345, 0.0009
  %v1362 = vadd.f32 %v1346, 0.0009
  %v1363 = vadd.f32 %v1347, 0.0009
  %v1364 = vadd.f32 %v1348, 0.0009
  %v1365 = vadd.f32 %v1349, 0.0009
  %v1366 = vadd.f32 %v1350, 0.0009
  %v1367 = vadd.f32 %v1351, 0.0009
  %v1368 = vadd.f32 %v1352, 0.0009
  %v1369 = vadd.f32 %v1353, 0.0009
  %1386 = vrot.lane.b32.xlu0 %v1354, 96
  %v1387 = vpop.permute.xlu0 %1386
  %1388 = vrot.lane.b32.xlu0 %v1355, 96
  %v1389 = vpop.permute.xlu0 %1388
  %1390 = vrot.lane.b32.xlu0 %v1356, 96
  %v1391 = vpop.permute.xlu0 %1390
  %1392 = vrot.lane.b32.xlu0 %v1357, 96
  %v1393 = vpop.permute.xlu0 %1392
  %1394 = vrot.lane.b32.xlu0 %v1358, 96
  %v1395 = vpop.permute.xlu0 %1394
  %1396 = vrot.lane.b32.xlu0 %v1359, 96
  %v1397 = vpop.permute.xlu0 %1396
  %1398 = vrot.lane.b32.xlu0 %v1360, 96
  %v1399 = vpop.permute.xlu0 %1398
  %1400 = vrot.lane.b32.xlu0 %v1361, 96
  %v1401 = vpop.permute.xlu0 %1400
  %1402 = vrot.lane.b32.xlu0 %v1362, 96
  %v1403 = vpop.permute.xlu0 %1402
  %1404 = vrot.lane.b32.xlu0 %v1363, 96
  %v1405 = vpop.permute.xlu0 %1404
  %1406 = vrot.lane.b32.xlu0 %v1364, 96
  %v1407 = vpop.permute.xlu0 %1406
  %1408 = vrot.lane.b32.xlu0 %v1365, 96
  %v1409 = vpop.permute.xlu0 %1408
  %1410 = vrot.lane.b32.xlu0 %v1366, 96
  %v1411 = vpop.permute.xlu0 %1410
  %1412 = vrot.lane.b32.xlu0 %v1367, 96
  %v1413 = vpop.permute.xlu0 %1412
  %1414 = vrot.lane.b32.xlu0 %v1368, 96
  %v1415 = vpop.permute.xlu0 %1414
  %1416 = vrot.lane.b32.xlu0 %v1369, 96
  %v1417 = vpop.permute.xlu0 %1416
  %v1434 = vmul.f32 %v1258, %v1387
  %v1435 = vmul.f32 %v1259, %v1389
  %v1436 = vmul.f32 %v1260, %v1391
  %v1437 = vmul.f32 %v1261, %v1393
  %v1438 = vmul.f32 %v1262, %v1395
  %v1439 = vmul.f32 %v1263, %v1397
  %v1440 = vmul.f32 %v1264, %v1399
  %v1441 = vmul.f32 %v1265, %v1401
  %v1442 = vmul.f32 %v1266, %v1403
  %v1443 = vmul.f32 %v1267, %v1405
  %v1444 = vmul.f32 %v1268, %v1407
  %v1445 = vmul.f32 %v1269, %v1409
  %v1446 = vmul.f32 %v1270, %v1411
  %v1447 = vmul.f32 %v1271, %v1413
  %v1448 = vmul.f32 %v1272, %v1415
  %v1449 = vmul.f32 %v1273, %v1417
  %v1450 = vrcp.pop %v1434
  %v1451 = vrcp.pop %v1435
  %v1452 = vrcp.pop %v1436
  %v1453 = vrcp.pop %v1437
  %v1454 = vrcp.pop %v1438
  %v1455 = vrcp.pop %v1439
  %v1456 = vrcp.pop %v1440
  %v1457 = vrcp.pop %v1441
  %v1458 = vrcp.pop %v1442
  %v1459 = vrcp.pop %v1443
  %v1460 = vrcp.pop %v1444
  %v1461 = vrcp.pop %v1445
  %v1462 = vrcp.pop %v1446
  %v1463 = vrcp.pop %v1447
  %v1464 = vrcp.pop %v1448
  %v1465 = vrcp.pop %v1449
  %v1466 = vmul.f32 %v1178, %v1450
  %v1467 = vmul.f32 %v1179, %v1451
  %v1468 = vmul.f32 %v1180, %v1452
  %v1469 = vmul.f32 %v1181, %v1453
  %v1470 = vmul.f32 %v1182, %v1454
  %v1471 = vmul.f32 %v1183, %v1455
  %v1472 = vmul.f32 %v1184, %v1456
  %v1473 = vmul.f32 %v1185, %v1457
  %v1474 = vmul.f32 %v1186, %v1458
  %v1475 = vmul.f32 %v1187, %v1459
  %v1476 = vmul.f32 %v1188, %v1460
  %v1477 = vmul.f32 %v1189, %v1461
  %v1478 = vmul.f32 %v1190, %v1462
  %v1479 = vmul.f32 %v1191, %v1463
  %v1480 = vmul.f32 %v1192, %v1464
  %v1481 = vmul.f32 %v1193, %v1465
  %v1482 = vsub.f32 %v120, %v136
  %v1483 = vsub.f32 %v121, %v137
  %v1484 = vsub.f32 %v122, %v138
  %v1485 = vsub.f32 %v123, %v139
  %v1486 = vsub.f32 %v124, %v140
  %v1487 = vsub.f32 %v125, %v141
  %v1488 = vsub.f32 %v126, %v142
  %v1489 = vsub.f32 %v127, %v143
  %v1490 = vsub.f32 %v128, %v144
  %v1491 = vsub.f32 %v129, %v145
  %v1492 = vsub.f32 %v130, %v146
  %v1493 = vsub.f32 %v131, %v147
  %v1494 = vsub.f32 %v132, %v148
  %v1495 = vsub.f32 %v133, %v149
  %v1496 = vsub.f32 %v134, %v150
  %v1497 = vsub.f32 %v135, %v151
  %v1498 = vand.u32 2147483647, %v1482
  %v1499 = vand.u32 2147483647, %v1483
  %v1500 = vand.u32 2147483647, %v1484
  %v1501 = vand.u32 2147483647, %v1485
  %v1502 = vand.u32 2147483647, %v1486
  %v1503 = vand.u32 2147483647, %v1487
  %v1504 = vand.u32 2147483647, %v1488
  %v1505 = vand.u32 2147483647, %v1489
  %v1506 = vand.u32 2147483647, %v1490
  %v1507 = vand.u32 2147483647, %v1491
  %v1508 = vand.u32 2147483647, %v1492
  %v1509 = vand.u32 2147483647, %v1493
  %v1510 = vand.u32 2147483647, %v1494
  %v1511 = vand.u32 2147483647, %v1495
  %v1512 = vand.u32 2147483647, %v1496
  %v1513 = vand.u32 2147483647, %v1497
  %v1514 = vld [vmem:[%s4] sm:$0xff]
  %v1515 = vld [vmem:[%s4 + $0x8] sm:$0xff]
  %v1516 = vld [vmem:[%s4 + $0x10] sm:$0xff]
  %v1517 = vld [vmem:[%s4 + $0x18] sm:$0xff]
  %v1518 = vld [vmem:[%s4 + $0x20] sm:$0xff]
  %v1519 = vld [vmem:[%s4 + $0x28] sm:$0xff]
  %v1520 = vld [vmem:[%s4 + $0x30] sm:$0xff]
  %v1521 = vld [vmem:[%s4 + $0x38] sm:$0xff]
  %v1522 = vld [vmem:[%s4 + $0x40] sm:$0xff]
  %v1523 = vld [vmem:[%s4 + $0x48] sm:$0xff]
  %v1524 = vld [vmem:[%s4 + $0x50] sm:$0xff]
  %v1525 = vld [vmem:[%s4 + $0x58] sm:$0xff]
  %v1526 = vld [vmem:[%s4 + $0x60] sm:$0xff]
  %v1527 = vld [vmem:[%s4 + $0x68] sm:$0xff]
  %v1528 = vld [vmem:[%s4 + $0x70] sm:$0xff]
  %v1529 = vld [vmem:[%s4 + $0x78] sm:$0xff]
  %v1530 = vadd.f32 %v1514, %v1466
  %v1531 = vadd.f32 %v1515, %v1467
  %v1532 = vadd.f32 %v1516, %v1468
  %v1533 = vadd.f32 %v1517, %v1469
  %v1534 = vadd.f32 %v1518, %v1470
  %v1535 = vadd.f32 %v1519, %v1471
  %v1536 = vadd.f32 %v1520, %v1472
  %v1537 = vadd.f32 %v1521, %v1473
  %v1538 = vadd.f32 %v1522, %v1474
  %v1539 = vadd.f32 %v1523, %v1475
  %v1540 = vadd.f32 %v1524, %v1476
  %v1541 = vadd.f32 %v1525, %v1477
  %v1542 = vadd.f32 %v1526, %v1478
  %v1543 = vadd.f32 %v1527, %v1479
  %v1544 = vadd.f32 %v1528, %v1480
  %v1545 = vadd.f32 %v1529, %v1481
  %1546 = vst.msk [vmem:[%s4] sm:$0xff] %vm152, %v1530
  %1547 = vst.msk [vmem:[%s4 + $0x8] sm:$0xff] %vm152, %v1531
  %1548 = vst.msk [vmem:[%s4 + $0x10] sm:$0xff] %vm152, %v1532
  %1549 = vst.msk [vmem:[%s4 + $0x18] sm:$0xff] %vm152, %v1533
  %1550 = vst.msk [vmem:[%s4 + $0x20] sm:$0xff] %vm152, %v1534
  %1551 = vst.msk [vmem:[%s4 + $0x28] sm:$0xff] %vm152, %v1535
  %1552 = vst.msk [vmem:[%s4 + $0x30] sm:$0xff] %vm152, %v1536
  %1553 = vst.msk [vmem:[%s4 + $0x38] sm:$0xff] %vm152, %v1537
  %1554 = vst.msk [vmem:[%s4 + $0x40] sm:$0xff] %vm152, %v1538
  %1555 = vst.msk [vmem:[%s4 + $0x48] sm:$0xff] %vm152, %v1539
  %1556 = vst.msk [vmem:[%s4 + $0x50] sm:$0xff] %vm152, %v1540
  %1557 = vst.msk [vmem:[%s4 + $0x58] sm:$0xff] %vm152, %v1541
  %1558 = vst.msk [vmem:[%s4 + $0x60] sm:$0xff] %vm152, %v1542
  %1559 = vst.msk [vmem:[%s4 + $0x68] sm:$0xff] %vm152, %v1543
  %1560 = vst.msk [vmem:[%s4 + $0x70] sm:$0xff] %vm152, %v1544
  %1561 = vst.msk [vmem:[%s4 + $0x78] sm:$0xff] %vm152, %v1545
  %v1562 = vld [vmem:[%s5] sm:$0xff]
  %v1563 = vld [vmem:[%s5 + $0x8] sm:$0xff]
  %v1564 = vld [vmem:[%s5 + $0x10] sm:$0xff]
  %v1565 = vld [vmem:[%s5 + $0x18] sm:$0xff]
  %v1566 = vld [vmem:[%s5 + $0x20] sm:$0xff]
  %v1567 = vld [vmem:[%s5 + $0x28] sm:$0xff]
  %v1568 = vld [vmem:[%s5 + $0x30] sm:$0xff]
  %v1569 = vld [vmem:[%s5 + $0x38] sm:$0xff]
  %v1570 = vld [vmem:[%s5 + $0x40] sm:$0xff]
  %v1571 = vld [vmem:[%s5 + $0x48] sm:$0xff]
  %v1572 = vld [vmem:[%s5 + $0x50] sm:$0xff]
  %v1573 = vld [vmem:[%s5 + $0x58] sm:$0xff]
  %v1574 = vld [vmem:[%s5 + $0x60] sm:$0xff]
  %v1575 = vld [vmem:[%s5 + $0x68] sm:$0xff]
  %v1576 = vld [vmem:[%s5 + $0x70] sm:$0xff]
  %v1577 = vld [vmem:[%s5 + $0x78] sm:$0xff]
  %v1578 = vadd.f32 %v1562, %v1498
  %v1579 = vadd.f32 %v1563, %v1499
  %v1580 = vadd.f32 %v1564, %v1500
  %v1581 = vadd.f32 %v1565, %v1501
  %v1582 = vadd.f32 %v1566, %v1502
  %v1583 = vadd.f32 %v1567, %v1503
  %v1584 = vadd.f32 %v1568, %v1504
  %v1585 = vadd.f32 %v1569, %v1505
  %v1586 = vadd.f32 %v1570, %v1506
  %v1587 = vadd.f32 %v1571, %v1507
  %v1588 = vadd.f32 %v1572, %v1508
  %v1589 = vadd.f32 %v1573, %v1509
  %v1590 = vadd.f32 %v1574, %v1510
  %v1591 = vadd.f32 %v1575, %v1511
  %v1592 = vadd.f32 %v1576, %v1512
  %v1593 = vadd.f32 %v1577, %v1513
  %1594 = vst.msk [vmem:[%s5] sm:$0xff] %vm152, %v1578
  %1595 = vst.msk [vmem:[%s5 + $0x8] sm:$0xff] %vm152, %v1579
  %1596 = vst.msk [vmem:[%s5 + $0x10] sm:$0xff] %vm152, %v1580
  %1597 = vst.msk [vmem:[%s5 + $0x18] sm:$0xff] %vm152, %v1581
  %1598 = vst.msk [vmem:[%s5 + $0x20] sm:$0xff] %vm152, %v1582
  %1599 = vst.msk [vmem:[%s5 + $0x28] sm:$0xff] %vm152, %v1583
  %1600 = vst.msk [vmem:[%s5 + $0x30] sm:$0xff] %vm152, %v1584
  %1601 = vst.msk [vmem:[%s5 + $0x38] sm:$0xff] %vm152, %v1585
  %1602 = vst.msk [vmem:[%s5 + $0x40] sm:$0xff] %vm152, %v1586
  %1603 = vst.msk [vmem:[%s5 + $0x48] sm:$0xff] %vm152, %v1587
  %1604 = vst.msk [vmem:[%s5 + $0x50] sm:$0xff] %vm152, %v1588
  %1605 = vst.msk [vmem:[%s5 + $0x58] sm:$0xff] %vm152, %v1589
  %1606 = vst.msk [vmem:[%s5 + $0x60] sm:$0xff] %vm152, %v1590
  %1607 = vst.msk [vmem:[%s5 + $0x68] sm:$0xff] %vm152, %v1591
  %1608 = vst.msk [vmem:[%s5 + $0x70] sm:$0xff] %vm152, %v1592
  %1609 = vst.msk [vmem:[%s5 + $0x78] sm:$0xff] %vm152, %v1593
  // Predicated region
  $region22: #{tpu_custom_call.1} parent=0 // pred_check
    _
  $region23: #{tpu_custom_call.1} parent=0 // pred_check_branch
    %1611 = sbr.rel (0) target = $region25
  $region24: #{tpu_custom_call.1} parent=0 // pred_region
    _
  $region25: #{tpu_custom_call.1} parent=0 // pred_fallthru
    _
  // Predicated region
  $region26: #{tpu_custom_call.1} parent=0 // pred_check
    _
  $region27: #{tpu_custom_call.1} parent=0 // pred_check_branch
    %1613 = sbr.rel (0) target = $region29
  $region28: #{tpu_custom_call.1} parent=0 // pred_region
    _
  $region29: #{tpu_custom_call.1} parent=0 // pred_fallthru
    _
  // Predicated region
  $region30: #{tpu_custom_call.1} parent=0 // pred_check
    _
  $region31: #{tpu_custom_call.1} parent=0 // pred_check_branch
    %1615 = sbr.rel (0) target = $region33
  $region32: #{tpu_custom_call.1} parent=0 // pred_region
    _
  $region33: #{tpu_custom_call.1} parent=0 // pred_fallthru
    _
  // Predicated region
  $region34: #{tpu_custom_call.1} parent=0 // pred_check
    _
  $region35: #{tpu_custom_call.1} parent=0 // pred_check_branch
    %1617 = sbr.rel (0) target = $region37
  $region36: #{tpu_custom_call.1} parent=0 // pred_region
    _
  $region37: #{tpu_custom_call.1} parent=0 // pred_fallthru
    _

</llo_original>
